<compile_context>
chip_gen: v6e
topology: v6e:2x2x1
jax: 0.10.0
libtpu: 0.0.40
codegen_flags: <defaults>
</compile_context>

<pallas_src>
import math
from functools import partial

import jax
import jax.numpy as jnp
from jax.experimental import pallas as pl
from jax.experimental.pallas import tpu as pltpu


def _gelu(x):
    # Exact (erf) GELU, matching torch.nn.GELU() default (approximate='none').
    return 0.5 * x * (1.0 + jax.lax.erf(x / math.sqrt(2.0)))


# ----------------------------------------------------------------------------
# Kernel
# ----------------------------------------------------------------------------
def tweet_head_kernel(mask_ref, hs_ref, l1_w_ref, l1_b_ref, l2_w_ref, l2_b_ref,
                      cnn_w_ref, cnn_b_ref, head_w_ref, head_b_ref, out_ref):
    Bt, S, C = hs_ref.shape
    H = C // 3
    M = Bt * S
    f32 = jnp.float32

    hs = hs_ref[...]                                    # (Bt, S, 3H) bf16
    cdt = hs.dtype
    x = hs.reshape(M, C)                                # flatten batch tile: M = Bt*S
    maskf = mask_ref[...].reshape(M, 1)                 # (M, 1) f32, values in {0, 1}

    # --------------- whole_head: masked average pool -> f32 MLP --------------
    # Pool on VPU/XLU (elementwise multiply + sublane sums) so no M=1 matmuls
    # sit in the MXU stream; the MLP FLOPs are negligible so the whole path
    # stays f32 with an exact divide (inf/nan for an all-padding row, as torch).
    xm = x.astype(f32) * maskf                          # (M, 3H) f32

    def _per_item_sums(v):                              # (M, n) -> (Bt, n)
        parts = [jnp.sum(v[b * S:(b + 1) * S], axis=0, keepdims=True)
                 for b in range(Bt)]
        return parts[0] if Bt == 1 else jnp.concatenate(parts, axis=0)

    avg = _per_item_sums(xm) / _per_item_sums(maskf)    # (Bt, 3H) f32
    h1 = _gelu(jnp.dot(avg, l1_w_ref[...], preferred_element_type=f32)
               + l1_b_ref[...])                         # (Bt, 256)
    whole = (jnp.dot(h1, l2_w_ref[...], preferred_element_type=f32)
             + l2_b_ref[...])                           # (Bt, 2)

    # -------- Conv1d(3H -> H, k=3, pad=1) + GELU: one wide-N MXU matmul ------
    # cnn_w_ref is (3H, 3H) with tap k living in lanes [k*H, (k+1)*H); a single
    # (M, 3H) @ (3H, 3H) matmul replaces the previous nine (S,H)@(H,H) matmuls.
    z = jnp.dot(x, cnn_w_ref[...], preferred_element_type=f32)      # (M, 3H) f32
    z_prev, z_cent, z_next = z[:, :H], z[:, H:2 * H], z[:, 2 * H:]

    # y[b, t] = z_prev[b, t-1] + z_cent[b, t] + z_next[b, t+1], zero at the
    # sequence edges; first/last also kill roll wrap-around across batch items.
    row = jax.lax.broadcasted_iota(jnp.int32, (M, 1), 0)
    first = row == 0
    last = row == S - 1
    for b in range(1, Bt):
        first = first | (row == b * S)
        last = last | (row == b * S + S - 1)
    y = (z_cent + cnn_b_ref[...]
         + jnp.where(first, 0.0, pltpu.roll(z_prev, shift=1, axis=0))
         + jnp.where(last, 0.0, pltpu.roll(z_next, shift=M - 1, axis=0)))
    y = _gelu(y)                                        # (M, H) f32

    # ------ fused se_head / inst_head + packed whole_out: one store ----------
    # head_w is (H, 8): lanes 0-3 = [se0, se1, inst0, inst1], lanes 4-7 zero;
    # whole_out is added into lanes 4-5 so each grid step issues one output DMA.
    seq8 = (jnp.dot(y.astype(cdt), head_w_ref[...], preferred_element_type=f32)
            + head_b_ref[...]).reshape(Bt, S, 8)
    lane = jax.lax.broadcasted_iota(jnp.int32, (1, 1, 8), 2)
    whole_lanes = (jnp.where(lane == 4, whole[:, None, 0:1], 0.0)
                   + jnp.where(lane == 5, whole[:, None, 1:2], 0.0))   # (Bt, 1, 8)
    out_ref[...] = seq8 + whole_lanes


# ----------------------------------------------------------------------------
# VMEM budget / batch-tile selection
# ----------------------------------------------------------------------------
def _ceil_to(x, m):
    return ((x + m - 1) // m) * m


def _pad2(rows, cols, itemsize):
    # (8, 128) VMEM tile padding of the two minor dims (approximate).
    return _ceil_to(max(rows, 1), 8) * _ceil_to(max(cols, 1), 128) * itemsize


def _estimate_vmem_bytes(bt, s, h, weight_bufs):
    """Rough per-step VMEM footprint: pipelined blocks + resident weights + temps."""
    c = 3 * h
    m = bt * s
    blocks = 2 * (bt * _pad2(s, c, 2)          # hs block (bf16), double-buffered
                  + bt * _pad2(s, 1, 4)        # mask block (f32)
                  + bt * _pad2(s, 8, 4))       # packed output block (f32)
    weights = weight_bufs * (_pad2(c, c, 2)          # fused conv weight (bf16)
                             + _pad2(c, 256, 4)      # l1_w (f32)
                             + _pad2(256, 2, 4)      # l2_w (f32)
                             + _pad2(h, 8, 2)        # fused head weight (bf16)
                             + _pad2(1, c, 4) + _pad2(1, 256, 4)
                             + _pad2(1, 2, 4) + _pad2(1, h, 4) + _pad2(1, 8, 4))
    temps = (2 * _pad2(m, c, 4)      # f32 masked copy for pooling + conv accumulator
             + 4 * _pad2(m, h, 4)    # tap slices / rolled taps / y
             + _pad2(m, 8, 4))       # packed head result
    return int(1.25 * (blocks + weights + temps))


def _vmem_budget_bytes():
    """Scoped-VMEM budget derived from the actual chip (v7x has only 64 MiB)."""
    try:
        cap = int(pltpu.get_tpu_info().vmem_capacity_bytes)
    except Exception:
        cap = 64 * 1024 * 1024          # conservative default: v7x-sized VMEM
    return max(32 * 1024 * 1024, min(int(0.62 * cap), 96 * 1024 * 1024))


def _pick_batch_tile(batch, s, h, budget, weight_bufs):
    """Batch tile that fits VMEM; prefers an even grid (both v7x TCs busy) and
    stops growing once M = bt*s fills the 256-deep MXU."""
    best_key, best_bt = None, 1
    for bt in range(1, batch + 1):
        if batch % bt:
            continue
        if _estimate_vmem_bytes(bt, s, h, weight_bufs) > budget:
            continue
        grid = batch // bt
        even = grid >= 2 and grid % 2 == 0
        fills_mxu = bt * s >= 256
        key = (even, fills_mxu, -bt if fills_mxu else bt)
        if best_key is None or key > best_key:
            best_key, best_bt = key, bt
    return best_bt


# ----------------------------------------------------------------------------
# Wrapper
# ----------------------------------------------------------------------------
def tweet_model_forward(hs1, hs2, hs3, masks, params, *, batch_tile=None,
                        single_buffer_weights=True, compute_dtype=jnp.bfloat16):
    B, S, H = hs1.shape
    C = 3 * H
    f32 = jnp.float32

    # --- wrapper-side layout plumbing (fused XLA casts / reshapes) ----------
    # The bf16 cast already writes fresh arrays, so concatenating the three
    # hidden states here costs no extra HBM traffic and gives one DMA per step.
    hs_cat = jnp.concatenate([hs1, hs2, hs3], axis=-1).astype(compute_dtype)  # (B, S, 3H)
    mask3 = masks.astype(f32).reshape(B, S, 1)

    # whole_head weights stay f32 (negligible FLOPs; tighter parity with torch).
    l1_w = params["l1_w"].astype(f32)                        # (3H, 256)
    l1_b = params["l1_b"].reshape(1, -1).astype(f32)         # (1, 256)
    l2_w = params["l2_w"].astype(f32)                        # (256, 2)
    l2_b = params["l2_b"].reshape(1, -1).astype(f32)         # (1, 2)
    # Conv taps fused along N: columns [k*H, (k+1)*H) hold tap k -> (3H, 3H).
    cnn_w = (jnp.transpose(params["cnn_w"], (1, 0, 2))
             .reshape(C, 3 * H).astype(compute_dtype))
    cnn_b = params["cnn_b"].reshape(1, -1).astype(f32)       # (1, H)
    # se/inst heads fused, zero-padded to 8 lanes (lanes 4-5 carry whole_out).
    head_w = jnp.zeros((H, 8), f32)
    head_w = head_w.at[:, 0:2].set(params["se_w"]).at[:, 2:4].set(params["inst_w"])
    head_w = head_w.astype(compute_dtype)
    head_b = jnp.zeros((1, 8), f32)
    head_b = head_b.at[:, 0:2].set(params["se_b"].reshape(1, 2))
    head_b = head_b.at[:, 2:4].set(params["inst_b"].reshape(1, 2))

    weight_bufs = 1 if single_buffer_weights else 2
    vmem_budget = _vmem_budget_bytes()
    if batch_tile is None:
        bt = _pick_batch_tile(B, S, H, vmem_budget, weight_bufs)
    else:
        assert B % batch_tile == 0, (B, batch_tile)
        bt = batch_tile
    grid = (B // bt,)

    def tiled(shape):
        nd = len(shape)
        return pl.BlockSpec((bt,) + tuple(shape[1:]),
                            lambda b, nd=nd: (b,) + (0,) * (nd - 1))

    def resident(x):
        # Full-array block, constant index -> DMA'd once, stays in VMEM.
        nd = x.ndim
        idx = lambda b, nd=nd: (0,) * nd
        if single_buffer_weights and hasattr(pl, "Buffered"):
            try:
                # weights never change across the grid: no need to double-buffer.
                return pl.BlockSpec(x.shape, idx, pipeline_mode=pl.Buffered(1))
            except TypeError:
                pass
        return pl.BlockSpec(x.shape, idx)

    weights = (l1_w, l1_b, l2_w, l2_b, cnn_w, cnn_b, head_w, head_b)
    in_specs = [tiled(mask3.shape), tiled(hs_cat.shape)] + [resident(w) for w in weights]

    out = pl.pallas_call(
        tweet_head_kernel,
        grid=grid,
        out_shape=jax.ShapeDtypeStruct((B, S, 8), f32),
        in_specs=in_specs,
        out_specs=pl.BlockSpec((bt, S, 8), lambda b: (b, 0, 0)),
        compiler_params=pltpu.CompilerParams(
            dimension_semantics=("parallel",),
            vmem_limit_bytes=vmem_budget,
        ),
    )(mask3, hs_cat, *weights)

    # Free XLA slices on the packed output slab.
    whole = out[:, 0, 4:6]
    return whole, out[:, :, 0], out[:, :, 1], out[:, :, 2:4]


# ----------------------------------------------------------------------------
# Pure-JAX reference + synthetic params + test harness
# ----------------------------------------------------------------------------
def _reference_forward(hs1, hs2, hs3, masks, params):
    seq = jnp.concatenate([hs1, hs2, hs3], axis=-1)
    avg = jnp.sum(seq * masks[:, :, None], axis=1) / jnp.sum(masks, axis=-1, keepdims=True)
    h1 = _gelu(avg @ params["l1_w"] + params["l1_b"])
    whole = h1 @ params["l2_w"] + params["l2_b"]
    B, S, C = seq.shape
    seq_pad = jnp.pad(seq, ((0, 0), (1, 1), (0, 0)))
    y = (jnp.einsum("bsc,ch->bsh", seq_pad[:, 0:S], params["cnn_w"][0])
         + jnp.einsum("bsc,ch->bsh", seq_pad[:, 1:S + 1], params["cnn_w"][1])
         + jnp.einsum("bsc,ch->bsh", seq_pad[:, 2:S + 2], params["cnn_w"][2])
         + params["cnn_b"])
    y = _gelu(y)
    se = y @ params["se_w"] + params["se_b"]
    inst = y @ params["inst_w"] + params["inst_b"]
    return whole, se[:, :, 0], se[:, :, 1], inst


def make_params(key, hidden):
    C = 3 * hidden
    ks = jax.random.split(key, 8)
    s = 0.02
    return {
        # whole_head
        "l1_w":   s * jax.random.normal(ks[0], (C, 256), jnp.float32),
        "l1_b":   jnp.zeros((1, 256), jnp.float32),
        "l2_w":   s * jax.random.normal(ks[1], (256, 2), jnp.float32),
        "l2_b":   jnp.zeros((1, 2), jnp.float32),
        # cnn: (kernel_tap, in_channels, out_channels)
        "cnn_w":  s * jax.random.normal(ks[2], (3, C, hidden), jnp.float32),
        "cnn_b":  s * jax.random.normal(ks[3], (1, hidden), jnp.float32),
        # se_head / inst_head
        "se_w":   s * jax.random.normal(ks[4], (hidden, 2), jnp.float32),
        "se_b":   s * jax.random.normal(ks[5], (1, 2), jnp.float32),
        "inst_w": s * jax.random.normal(ks[6], (hidden, 2), jnp.float32),
        "inst_b": s * jax.random.normal(ks[7], (1, 2), jnp.float32),
    }


def _forward(hs1, hs2, hs3, masks, params, **kw):
    try:
        fn = jax.jit(partial(tweet_model_forward, single_buffer_weights=True, **kw))
        return jax.block_until_ready(fn(hs1, hs2, hs3, masks, params))
    except Exception:
        # Backend rejected pipeline_mode=pl.Buffered(1): fall back to default
        # (double-buffered) resident weights.
        fn = jax.jit(partial(tweet_model_forward, single_buffer_weights=False, **kw))
        return jax.block_until_ready(fn(hs1, hs2, hs3, masks, params))


if __name__ == "__main__":
    B, S, H = 2, 8, 32   # batch, seq_len, bert hidden size (small synthetic config)

    key = jax.random.PRNGKey(0)
    k_hs1, k_hs2, k_hs3, k_params = jax.random.split(key, 4)

    hs1 = jax.random.normal(k_hs1, (B, S, H), jnp.float32)   # hs[-1]
    hs2 = jax.random.normal(k_hs2, (B, S, H), jnp.float32)   # hs[-2]
    hs3 = jax.random.normal(k_hs3, (B, S, H), jnp.float32)   # hs[-3]
    masks = jnp.ones((B, S), jnp.float32).at[1, S - 2:].set(0.0)  # padded tail on batch 1

    params = make_params(k_params, H)
    refs = _reference_forward(hs1, hs2, hs3, masks, params)

    # Two configs: auto batch tile (Bt=1 here -> even grid of 2) and a forced
    # multi-batch tile (Bt=B) that exercises the flattened roll + per-item
    # edge masks and the batched pooling path.
    for bt in (None, B):
        outs = _forward(hs1, hs2, hs3, masks, params, batch_tile=bt)
        for o, r in zip(outs, refs):
            assert o.shape == r.shape, (o.shape, r.shape)
            # bf16 MXU compute vs f32 reference -> loosened tolerance.
            assert jnp.allclose(o, r, atol=2e-2, rtol=2e-2), (bt, jnp.max(jnp.abs(o - r)))

    print("KERNEL_OK")
</pallas_src>

<mosaic_0001>
module attributes {stable_mosaic.version = 11 : i64} {
  func.func @tweet_head_kernel(%arg0: i32, %arg1: memref<1x8x1xf32, #tpu.memory_space<vmem>>, %arg2: memref<1x8x96xbf16, #tpu.memory_space<vmem>>, %arg3: memref<96x256xf32, #tpu.memory_space<vmem>>, %arg4: memref<1x256xf32, #tpu.memory_space<vmem>>, %arg5: memref<256x2xf32, #tpu.memory_space<vmem>>, %arg6: memref<1x2xf32, #tpu.memory_space<vmem>>, %arg7: memref<96x96xbf16, #tpu.memory_space<vmem>>, %arg8: memref<1x32xf32, #tpu.memory_space<vmem>>, %arg9: memref<32x8xbf16, #tpu.memory_space<vmem>>, %arg10: memref<1x8xf32, #tpu.memory_space<vmem>>, %arg11: memref<1x8x8xf32, #tpu.memory_space<vmem>>) attributes {dimension_semantics = [#tpu.dimension_semantics<parallel>], iteration_bounds = array<i64: 2>, scalar_prefetch = 0 : i64, scratch_operands = 0 : i64, tpu.core_type = #tpu.core_type<tc>, window_params = [{transform_indices = @transform_0, window_bounds = array<i64: 1, 8, 1>}, {transform_indices = @transform_1, window_bounds = array<i64: 1, 8, 96>}, {pipeline_mode = #tpu.pipeline_mode<synchronous>, transform_indices = @transform_2, window_bounds = array<i64: 96, 256>}, {pipeline_mode = #tpu.pipeline_mode<synchronous>, transform_indices = @transform_3, window_bounds = array<i64: 1, 256>}, {pipeline_mode = #tpu.pipeline_mode<synchronous>, transform_indices = @transform_4, window_bounds = array<i64: 256, 2>}, {pipeline_mode = #tpu.pipeline_mode<synchronous>, transform_indices = @transform_5, window_bounds = array<i64: 1, 2>}, {pipeline_mode = #tpu.pipeline_mode<synchronous>, transform_indices = @transform_6, window_bounds = array<i64: 96, 96>}, {pipeline_mode = #tpu.pipeline_mode<synchronous>, transform_indices = @transform_7, window_bounds = array<i64: 1, 32>}, {pipeline_mode = #tpu.pipeline_mode<synchronous>, transform_indices = @transform_8, window_bounds = array<i64: 32, 8>}, {pipeline_mode = #tpu.pipeline_mode<synchronous>, transform_indices = @transform_9, window_bounds = array<i64: 1, 8>}, {transform_indices = @transform_10, window_bounds = array<i64: 1, 8, 8>}]} {
    %c0 = arith.constant 0 : index
    %c0_0 = arith.constant 0 : index
    %c0_1 = arith.constant 0 : index
    %0 = vector.load %arg2[%c0, %c0_0, %c0_1] : memref<1x8x96xbf16, #tpu.memory_space<vmem>>, vector<1x8x96xbf16>
    %1 = vector.shape_cast %0 : vector<1x8x96xbf16> to vector<8x96xbf16>
    %c0_2 = arith.constant 0 : index
    %c0_3 = arith.constant 0 : index
    %c0_4 = arith.constant 0 : index
    %2 = vector.load %arg1[%c0_2, %c0_3, %c0_4] : memref<1x8x1xf32, #tpu.memory_space<vmem>>, vector<1x8x1xf32>
    %3 = vector.shape_cast %2 : vector<1x8x1xf32> to vector<8x1xf32>
    %4 = arith.extf %1 : vector<8x96xbf16> to vector<8x96xf32>
    %5 = vector.broadcast %3 : vector<8x1xf32> to vector<8x96xf32>
    %6 = arith.mulf %4, %5 : vector<8x96xf32>
    %cst = arith.constant dense<0.000000e+00> : vector<96xf32>
    %7 = vector.multi_reduction <add>, %6, %cst [0] : vector<8x96xf32> to vector<96xf32>
    %8 = vector.shape_cast %7 : vector<96xf32> to vector<1x96xf32>
    %cst_5 = arith.constant dense<0.000000e+00> : vector<1xf32>
    %9 = vector.multi_reduction <add>, %3, %cst_5 [0] : vector<8x1xf32> to vector<1xf32>
    %10 = vector.shape_cast %9 : vector<1xf32> to vector<1x1xf32>
    %11 = vector.broadcast %10 : vector<1x1xf32> to vector<1x96xf32>
    %12 = arith.divf %8, %11 : vector<1x96xf32>
    %c0_6 = arith.constant 0 : index
    %c0_7 = arith.constant 0 : index
    %13 = vector.load %arg3[%c0_6, %c0_7] : memref<96x256xf32, #tpu.memory_space<vmem>>, vector<96x256xf32>
    %cst_8 = arith.constant dense<0.000000e+00> : vector<1x256xf32>
    %14 = tpu.matmul %12, %13, %cst_8 {dimension_numbers = #tpu.dot_dimension_numbers<[1], [0], [0], [1], [0, 0, 1, 1], [], []>} : vector<1x96xf32>, vector<96x256xf32>, vector<1x256xf32> -> vector<1x256xf32>
    %c0_9 = arith.constant 0 : index
    %c0_10 = arith.constant 0 : index
    %15 = vector.load %arg4[%c0_9, %c0_10] : memref<1x256xf32, #tpu.memory_space<vmem>>, vector<1x256xf32>
    %16 = arith.addf %14, %15 : vector<1x256xf32>
    %cst_11 = arith.constant 5.000000e-01 : f32
    %17 = vector.broadcast %cst_11 : f32 to vector<1x256xf32>
    %18 = arith.mulf %17, %16 : vector<1x256xf32>
    %cst_12 = arith.constant 1.41421354 : f32
    %19 = vector.broadcast %cst_12 : f32 to vector<1x256xf32>
    %20 = arith.divf %16, %19 : vector<1x256xf32>
    %21 = math.erf %20 : vector<1x256xf32>
    %cst_13 = arith.constant 1.000000e+00 : f32
    %22 = vector.broadcast %cst_13 : f32 to vector<1x256xf32>
    %23 = arith.addf %22, %21 : vector<1x256xf32>
    %24 = arith.mulf %18, %23 : vector<1x256xf32>
    %c0_14 = arith.constant 0 : index
    %c0_15 = arith.constant 0 : index
    %25 = vector.load %arg5[%c0_14, %c0_15] : memref<256x2xf32, #tpu.memory_space<vmem>>, vector<256x2xf32>
    %cst_16 = arith.constant dense<0.000000e+00> : vector<1x2xf32>
    %26 = tpu.matmul %24, %25, %cst_16 {dimension_numbers = #tpu.dot_dimension_numbers<[1], [0], [0], [1], [0, 0, 1, 1], [], []>} : vector<1x256xf32>, vector<256x2xf32>, vector<1x2xf32> -> vector<1x2xf32>
    %c0_17 = arith.constant 0 : index
    %c0_18 = arith.constant 0 : index
    %27 = vector.load %arg6[%c0_17, %c0_18] : memref<1x2xf32, #tpu.memory_space<vmem>>, vector<1x2xf32>
    %28 = arith.addf %26, %27 : vector<1x2xf32>
    %c0_19 = arith.constant 0 : index
    %c0_20 = arith.constant 0 : index
    %29 = vector.load %arg7[%c0_19, %c0_20] : memref<96x96xbf16, #tpu.memory_space<vmem>>, vector<96x96xbf16>
    %cst_21 = arith.constant dense<0.000000e+00> : vector<8x96xf32>
    %30 = tpu.matmul %1, %29, %cst_21 {dimension_numbers = #tpu.dot_dimension_numbers<[1], [0], [0], [1], [0, 0, 1, 1], [], []>} : vector<8x96xbf16>, vector<96x96xbf16>, vector<8x96xf32> -> vector<8x96xf32>
    %31 = vector.extract_strided_slice %30 {offsets = [0, 0], sizes = [8, 32], strides = [1, 1]} : vector<8x96xf32> to vector<8x32xf32>
    %32 = vector.extract_strided_slice %30 {offsets = [0, 32], sizes = [8, 32], strides = [1, 1]} : vector<8x96xf32> to vector<8x32xf32>
    %33 = vector.extract_strided_slice %30 {offsets = [0, 64], sizes = [8, 32], strides = [1, 1]} : vector<8x96xf32> to vector<8x32xf32>
    %34 = tpu.iota {dimensions = array<i32: 0>} : vector<8x1xi32>
    %c0_i32 = arith.constant 0 : i32
    %35 = vector.broadcast %c0_i32 : i32 to vector<8x1xi32>
    %36 = arith.cmpi eq, %34, %35 : vector<8x1xi32>
    %c7_i32 = arith.constant 7 : i32
    %37 = vector.broadcast %c7_i32 : i32 to vector<8x1xi32>
    %38 = arith.cmpi eq, %34, %37 : vector<8x1xi32>
    %c0_22 = arith.constant 0 : index
    %c0_23 = arith.constant 0 : index
    %39 = vector.load %arg8[%c0_22, %c0_23] : memref<1x32xf32, #tpu.memory_space<vmem>>, vector<1x32xf32>
    %40 = vector.broadcast %39 : vector<1x32xf32> to vector<8x32xf32>
    %41 = arith.addf %32, %40 : vector<8x32xf32>
    %c1_i32 = arith.constant 1 : i32
    %42 = tpu.dynamic_rotate %31 by %c1_i32 dim 0 : vector<8x32xf32>, i32 -> vector<8x32xf32>
    %cst_24 = arith.constant 0.000000e+00 : f32
    %43 = vector.shape_cast %36 : vector<8x1xi1> to vector<8x1xi1>
    %44 = vector.broadcast %43 : vector<8x1xi1> to vector<8x32xi1>
    %45 = vector.broadcast %cst_24 : f32 to vector<8x32xf32>
    %46 = arith.select %44, %45, %42 : vector<8x32xi1>, vector<8x32xf32>
    %47 = arith.addf %41, %46 : vector<8x32xf32>
    %c7_i32_25 = arith.constant 7 : i32
    %48 = tpu.dynamic_rotate %33 by %c7_i32_25 dim 0 : vector<8x32xf32>, i32 -> vector<8x32xf32>
    %cst_26 = arith.constant 0.000000e+00 : f32
    %49 = vector.shape_cast %38 : vector<8x1xi1> to vector<8x1xi1>
    %50 = vector.broadcast %49 : vector<8x1xi1> to vector<8x32xi1>
    %51 = vector.broadcast %cst_26 : f32 to vector<8x32xf32>
    %52 = arith.select %50, %51, %48 : vector<8x32xi1>, vector<8x32xf32>
    %53 = arith.addf %47, %52 : vector<8x32xf32>
    %cst_27 = arith.constant 5.000000e-01 : f32
    %54 = vector.broadcast %cst_27 : f32 to vector<8x32xf32>
    %55 = arith.mulf %54, %53 : vector<8x32xf32>
    %cst_28 = arith.constant 1.41421354 : f32
    %56 = vector.broadcast %cst_28 : f32 to vector<8x32xf32>
    %57 = arith.divf %53, %56 : vector<8x32xf32>
    %58 = math.erf %57 : vector<8x32xf32>
    %cst_29 = arith.constant 1.000000e+00 : f32
    %59 = vector.broadcast %cst_29 : f32 to vector<8x32xf32>
    %60 = arith.addf %59, %58 : vector<8x32xf32>
    %61 = arith.mulf %55, %60 : vector<8x32xf32>
    %62 = arith.truncf %61 : vector<8x32xf32> to vector<8x32xbf16>
    %c0_30 = arith.constant 0 : index
    %c0_31 = arith.constant 0 : index
    %63 = vector.load %arg9[%c0_30, %c0_31] : memref<32x8xbf16, #tpu.memory_space<vmem>>, vector<32x8xbf16>
    %cst_32 = arith.constant dense<0.000000e+00> : vector<8x8xf32>
    %64 = tpu.matmul %62, %63, %cst_32 {dimension_numbers = #tpu.dot_dimension_numbers<[1], [0], [0], [1], [0, 0, 1, 1], [], []>} : vector<8x32xbf16>, vector<32x8xbf16>, vector<8x8xf32> -> vector<8x8xf32>
    %c0_33 = arith.constant 0 : index
    %c0_34 = arith.constant 0 : index
    %65 = vector.load %arg10[%c0_33, %c0_34] : memref<1x8xf32, #tpu.memory_space<vmem>>, vector<1x8xf32>
    %66 = vector.broadcast %65 : vector<1x8xf32> to vector<8x8xf32>
    %67 = arith.addf %64, %66 : vector<8x8xf32>
    %68 = vector.shape_cast %67 : vector<8x8xf32> to vector<1x8x8xf32>
    %69 = tpu.iota {dimensions = array<i32: 2>} : vector<1x1x8xi32>
    %c4_i32 = arith.constant 4 : i32
    %70 = vector.broadcast %c4_i32 : i32 to vector<1x1x8xi32>
    %71 = arith.cmpi eq, %69, %70 : vector<1x1x8xi32>
    %72 = vector.extract_strided_slice %28 {offsets = [0, 0], sizes = [1, 1], strides = [1, 1]} : vector<1x2xf32> to vector<1x1xf32>
    %73 = vector.shape_cast %72 : vector<1x1xf32> to vector<1x1x1xf32>
    %cst_35 = arith.constant 0.000000e+00 : f32
    %74 = vector.shape_cast %73 : vector<1x1x1xf32> to vector<1x1x1xf32>
    %75 = vector.broadcast %74 : vector<1x1x1xf32> to vector<1x1x8xf32>
    %76 = vector.broadcast %cst_35 : f32 to vector<1x1x8xf32>
    %77 = arith.select %71, %75, %76 : vector<1x1x8xi1>, vector<1x1x8xf32>
    %c5_i32 = arith.constant 5 : i32
    %78 = vector.broadcast %c5_i32 : i32 to vector<1x1x8xi32>
    %79 = arith.cmpi eq, %69, %78 : vector<1x1x8xi32>
    %80 = vector.extract_strided_slice %28 {offsets = [0, 1], sizes = [1, 1], strides = [1, 1]} : vector<1x2xf32> to vector<1x1xf32>
    %81 = vector.shape_cast %80 : vector<1x1xf32> to vector<1x1x1xf32>
    %cst_36 = arith.constant 0.000000e+00 : f32
    %82 = vector.shape_cast %81 : vector<1x1x1xf32> to vector<1x1x1xf32>
    %83 = vector.broadcast %82 : vector<1x1x1xf32> to vector<1x1x8xf32>
    %84 = vector.broadcast %cst_36 : f32 to vector<1x1x8xf32>
    %85 = arith.select %79, %83, %84 : vector<1x1x8xi1>, vector<1x1x8xf32>
    %86 = arith.addf %77, %85 : vector<1x1x8xf32>
    %87 = vector.broadcast %86 : vector<1x1x8xf32> to vector<1x8x8xf32>
    %88 = arith.addf %68, %87 : vector<1x8x8xf32>
    %c0_37 = arith.constant 0 : index
    %c0_38 = arith.constant 0 : index
    %c0_39 = arith.constant 0 : index
    %89 = vector.load %arg11[%c0_37, %c0_38, %c0_39] : memref<1x8x8xf32, #tpu.memory_space<vmem>>, vector<1x8x8xf32>
    tpu.vector_store %arg11[%c0_37, %c0_38, %c0_39], %88 {strides = array<i32>} : memref<1x8x8xf32, #tpu.memory_space<vmem>>, vector<1x8x8xf32>,
    return
  }
  func.func @transform_0(%arg0: i32) -> (i32, i32, i32) {
    %c0_i32 = arith.constant 0 : i32
    %c0_i32_0 = arith.constant 0 : i32
    %c0_i32_1 = arith.constant 0 : i32
    return %arg0, %c0_i32, %c0_i32_0 : i32, i32, i32
  }
  func.func @transform_1(%arg0: i32) -> (i32, i32, i32) {
    %c0_i32 = arith.constant 0 : i32
    %c0_i32_0 = arith.constant 0 : i32
    %c0_i32_1 = arith.constant 0 : i32
    return %arg0, %c0_i32, %c0_i32_0 : i32, i32, i32
  }
  func.func @transform_2(%arg0: i32) -> (i32, i32) {
    %c0_i32 = arith.constant 0 : i32
    %c0_i32_0 = arith.constant 0 : i32
    %c0_i32_1 = arith.constant 0 : i32
    return %c0_i32, %c0_i32_0 : i32, i32
  }
  func.func @transform_3(%arg0: i32) -> (i32, i32) {
    %c0_i32 = arith.constant 0 : i32
    %c0_i32_0 = arith.constant 0 : i32
    %c0_i32_1 = arith.constant 0 : i32
    return %c0_i32, %c0_i32_0 : i32, i32
  }
  func.func @transform_4(%arg0: i32) -> (i32, i32) {
    %c0_i32 = arith.constant 0 : i32
    %c0_i32_0 = arith.constant 0 : i32
    %c0_i32_1 = arith.constant 0 : i32
    return %c0_i32, %c0_i32_0 : i32, i32
  }
  func.func @transform_5(%arg0: i32) -> (i32, i32) {
    %c0_i32 = arith.constant 0 : i32
    %c0_i32_0 = arith.constant 0 : i32
    %c0_i32_1 = arith.constant 0 : i32
    return %c0_i32, %c0_i32_0 : i32, i32
  }
  func.func @transform_6(%arg0: i32) -> (i32, i32) {
    %c0_i32 = arith.constant 0 : i32
    %c0_i32_0 = arith.constant 0 : i32
    %c0_i32_1 = arith.constant 0 : i32
    return %c0_i32, %c0_i32_0 : i32, i32
  }
  func.func @transform_7(%arg0: i32) -> (i32, i32) {
    %c0_i32 = arith.constant 0 : i32
    %c0_i32_0 = arith.constant 0 : i32
    %c0_i32_1 = arith.constant 0 : i32
    return %c0_i32, %c0_i32_0 : i32, i32
  }
  func.func @transform_8(%arg0: i32) -> (i32, i32) {
    %c0_i32 = arith.constant 0 : i32
    %c0_i32_0 = arith.constant 0 : i32
    %c0_i32_1 = arith.constant 0 : i32
    return %c0_i32, %c0_i32_0 : i32, i32
  }
  func.func @transform_9(%arg0: i32) -> (i32, i32) {
    %c0_i32 = arith.constant 0 : i32
    %c0_i32_0 = arith.constant 0 : i32
    %c0_i32_1 = arith.constant 0 : i32
    return %c0_i32, %c0_i32_0 : i32, i32
  }
  func.func @transform_10(%arg0: i32) -> (i32, i32, i32) {
    %c0_i32 = arith.constant 0 : i32
    %c0_i32_0 = arith.constant 0 : i32
    %c0_i32_1 = arith.constant 0 : i32
    return %arg0, %c0_i32, %c0_i32_0 : i32, i32, i32
  }
}

module attributes {stable_mosaic.version = 11 : i64} {
  func.func @tweet_head_kernel(%arg0: i32, %arg1: memref<1x8x1xf32, #tpu.memory_space<vmem>>, %arg2: memref<1x8x96xbf16, #tpu.memory_space<vmem>>, %arg3: memref<96x256xf32, #tpu.memory_space<vmem>>, %arg4: memref<1x256xf32, #tpu.memory_space<vmem>>, %arg5: memref<256x2xf32, #tpu.memory_space<vmem>>, %arg6: memref<1x2xf32, #tpu.memory_space<vmem>>, %arg7: memref<96x96xbf16, #tpu.memory_space<vmem>>, %arg8: memref<1x32xf32, #tpu.memory_space<vmem>>, %arg9: memref<32x8xbf16, #tpu.memory_space<vmem>>, %arg10: memref<1x8xf32, #tpu.memory_space<vmem>>, %arg11: memref<1x8x8xf32, #tpu.memory_space<vmem>>) attributes {dimension_semantics = [#tpu.dimension_semantics<parallel>], iteration_bounds = array<i64: 2>, scalar_prefetch = 0 : i64, scratch_operands = 0 : i64, tpu.core_type = #tpu.core_type<tc>, window_params = [{transform_indices = @transform_0, window_bounds = array<i64: 1, 8, 1>}, {transform_indices = @transform_1, window_bounds = array<i64: 1, 8, 96>}, {pipeline_mode = #tpu.pipeline_mode<synchronous>, transform_indices = @transform_2, window_bounds = array<i64: 96, 256>}, {pipeline_mode = #tpu.pipeline_mode<synchronous>, transform_indices = @transform_3, window_bounds = array<i64: 1, 256>}, {pipeline_mode = #tpu.pipeline_mode<synchronous>, transform_indices = @transform_4, window_bounds = array<i64: 256, 2>}, {pipeline_mode = #tpu.pipeline_mode<synchronous>, transform_indices = @transform_5, window_bounds = array<i64: 1, 2>}, {pipeline_mode = #tpu.pipeline_mode<synchronous>, transform_indices = @transform_6, window_bounds = array<i64: 96, 96>}, {pipeline_mode = #tpu.pipeline_mode<synchronous>, transform_indices = @transform_7, window_bounds = array<i64: 1, 32>}, {pipeline_mode = #tpu.pipeline_mode<synchronous>, transform_indices = @transform_8, window_bounds = array<i64: 32, 8>}, {pipeline_mode = #tpu.pipeline_mode<synchronous>, transform_indices = @transform_9, window_bounds = array<i64: 1, 8>}, {transform_indices = @transform_10, window_bounds = array<i64: 1, 8, 8>}]} {
    %c0 = arith.constant 0 : index
    %c0_0 = arith.constant 0 : index
    %c0_1 = arith.constant 0 : index
    %0 = vector.load %arg2[%c0, %c0_0, %c0_1] : memref<1x8x96xbf16, #tpu.memory_space<vmem>>, vector<1x8x96xbf16>
    %1 = vector.shape_cast %0 : vector<1x8x96xbf16> to vector<8x96xbf16>
    %c0_2 = arith.constant 0 : index
    %c0_3 = arith.constant 0 : index
    %c0_4 = arith.constant 0 : index
    %2 = vector.load %arg1[%c0_2, %c0_3, %c0_4] : memref<1x8x1xf32, #tpu.memory_space<vmem>>, vector<1x8x1xf32>
    %3 = vector.shape_cast %2 : vector<1x8x1xf32> to vector<8x1xf32>
    %4 = arith.extf %1 : vector<8x96xbf16> to vector<8x96xf32>
    %5 = vector.broadcast %3 : vector<8x1xf32> to vector<8x96xf32>
    %6 = arith.mulf %4, %5 : vector<8x96xf32>
    %cst = arith.constant dense<0.000000e+00> : vector<96xf32>
    %7 = vector.multi_reduction <add>, %6, %cst [0] : vector<8x96xf32> to vector<96xf32>
    %8 = vector.shape_cast %7 : vector<96xf32> to vector<1x96xf32>
    %cst_5 = arith.constant dense<0.000000e+00> : vector<1xf32>
    %9 = vector.multi_reduction <add>, %3, %cst_5 [0] : vector<8x1xf32> to vector<1xf32>
    %10 = vector.shape_cast %9 : vector<1xf32> to vector<1x1xf32>
    %11 = vector.broadcast %10 : vector<1x1xf32> to vector<1x96xf32>
    %12 = arith.divf %8, %11 : vector<1x96xf32>
    %c0_6 = arith.constant 0 : index
    %c0_7 = arith.constant 0 : index
    %13 = vector.load %arg3[%c0_6, %c0_7] : memref<96x256xf32, #tpu.memory_space<vmem>>, vector<96x256xf32>
    %cst_8 = arith.constant dense<0.000000e+00> : vector<1x256xf32>
    %14 = tpu.matmul %12, %13, %cst_8 {dimension_numbers = #tpu.dot_dimension_numbers<[1], [0], [0], [1], [0, 0, 1, 1], [], []>} : vector<1x96xf32>, vector<96x256xf32>, vector<1x256xf32> -> vector<1x256xf32>
    %c0_9 = arith.constant 0 : index
    %c0_10 = arith.constant 0 : index
    %15 = vector.load %arg4[%c0_9, %c0_10] : memref<1x256xf32, #tpu.memory_space<vmem>>, vector<1x256xf32>
    %16 = arith.addf %14, %15 : vector<1x256xf32>
    %cst_11 = arith.constant 5.000000e-01 : f32
    %17 = vector.broadcast %cst_11 : f32 to vector<1x256xf32>
    %18 = arith.mulf %17, %16 : vector<1x256xf32>
    %cst_12 = arith.constant 1.41421354 : f32
    %19 = vector.broadcast %cst_12 : f32 to vector<1x256xf32>
    %20 = arith.divf %16, %19 : vector<1x256xf32>
    %21 = math.erf %20 : vector<1x256xf32>
    %cst_13 = arith.constant 1.000000e+00 : f32
    %22 = vector.broadcast %cst_13 : f32 to vector<1x256xf32>
    %23 = arith.addf %22, %21 : vector<1x256xf32>
    %24 = arith.mulf %18, %23 : vector<1x256xf32>
    %c0_14 = arith.constant 0 : index
    %c0_15 = arith.constant 0 : index
    %25 = vector.load %arg5[%c0_14, %c0_15] : memref<256x2xf32, #tpu.memory_space<vmem>>, vector<256x2xf32>
    %cst_16 = arith.constant dense<0.000000e+00> : vector<1x2xf32>
    %26 = tpu.matmul %24, %25, %cst_16 {dimension_numbers = #tpu.dot_dimension_numbers<[1], [0], [0], [1], [0, 0, 1, 1], [], []>} : vector<1x256xf32>, vector<256x2xf32>, vector<1x2xf32> -> vector<1x2xf32>
    %c0_17 = arith.constant 0 : index
    %c0_18 = arith.constant 0 : index
    %27 = vector.load %arg6[%c0_17, %c0_18] : memref<1x2xf32, #tpu.memory_space<vmem>>, vector<1x2xf32>
    %28 = arith.addf %26, %27 : vector<1x2xf32>
    %c0_19 = arith.constant 0 : index
    %c0_20 = arith.constant 0 : index
    %29 = vector.load %arg7[%c0_19, %c0_20] : memref<96x96xbf16, #tpu.memory_space<vmem>>, vector<96x96xbf16>
    %cst_21 = arith.constant dense<0.000000e+00> : vector<8x96xf32>
    %30 = tpu.matmul %1, %29, %cst_21 {dimension_numbers = #tpu.dot_dimension_numbers<[1], [0], [0], [1], [0, 0, 1, 1], [], []>} : vector<8x96xbf16>, vector<96x96xbf16>, vector<8x96xf32> -> vector<8x96xf32>
    %31 = vector.extract_strided_slice %30 {offsets = [0, 0], sizes = [8, 32], strides = [1, 1]} : vector<8x96xf32> to vector<8x32xf32>
    %32 = vector.extract_strided_slice %30 {offsets = [0, 32], sizes = [8, 32], strides = [1, 1]} : vector<8x96xf32> to vector<8x32xf32>
    %33 = vector.extract_strided_slice %30 {offsets = [0, 64], sizes = [8, 32], strides = [1, 1]} : vector<8x96xf32> to vector<8x32xf32>
    %34 = tpu.iota {dimensions = array<i32: 0>} : vector<8x1xi32>
    %c0_i32 = arith.constant 0 : i32
    %35 = vector.broadcast %c0_i32 : i32 to vector<8x1xi32>
    %36 = arith.cmpi eq, %34, %35 : vector<8x1xi32>
    %c7_i32 = arith.constant 7 : i32
    %37 = vector.broadcast %c7_i32 : i32 to vector<8x1xi32>
    %38 = arith.cmpi eq, %34, %37 : vector<8x1xi32>
    %c0_22 = arith.constant 0 : index
    %c0_23 = arith.constant 0 : index
    %39 = vector.load %arg8[%c0_22, %c0_23] : memref<1x32xf32, #tpu.memory_space<vmem>>, vector<1x32xf32>
    %40 = vector.broadcast %39 : vector<1x32xf32> to vector<8x32xf32>
    %41 = arith.addf %32, %40 : vector<8x32xf32>
    %c1_i32 = arith.constant 1 : i32
    %42 = tpu.dynamic_rotate %31 by %c1_i32 dim 0 : vector<8x32xf32>, i32 -> vector<8x32xf32>
    %cst_24 = arith.constant 0.000000e+00 : f32
    %43 = vector.shape_cast %36 : vector<8x1xi1> to vector<8x1xi1>
    %44 = vector.broadcast %43 : vector<8x1xi1> to vector<8x32xi1>
    %45 = vector.broadcast %cst_24 : f32 to vector<8x32xf32>
    %46 = arith.select %44, %45, %42 : vector<8x32xi1>, vector<8x32xf32>
    %47 = arith.addf %41, %46 : vector<8x32xf32>
    %c7_i32_25 = arith.constant 7 : i32
    %48 = tpu.dynamic_rotate %33 by %c7_i32_25 dim 0 : vector<8x32xf32>, i32 -> vector<8x32xf32>
    %cst_26 = arith.constant 0.000000e+00 : f32
    %49 = vector.shape_cast %38 : vector<8x1xi1> to vector<8x1xi1>
    %50 = vector.broadcast %49 : vector<8x1xi1> to vector<8x32xi1>
    %51 = vector.broadcast %cst_26 : f32 to vector<8x32xf32>
    %52 = arith.select %50, %51, %48 : vector<8x32xi1>, vector<8x32xf32>
    %53 = arith.addf %47, %52 : vector<8x32xf32>
    %cst_27 = arith.constant 5.000000e-01 : f32
    %54 = vector.broadcast %cst_27 : f32 to vector<8x32xf32>
    %55 = arith.mulf %54, %53 : vector<8x32xf32>
    %cst_28 = arith.constant 1.41421354 : f32
    %56 = vector.broadcast %cst_28 : f32 to vector<8x32xf32>
    %57 = arith.divf %53, %56 : vector<8x32xf32>
    %58 = math.erf %57 : vector<8x32xf32>
    %cst_29 = arith.constant 1.000000e+00 : f32
    %59 = vector.broadcast %cst_29 : f32 to vector<8x32xf32>
    %60 = arith.addf %59, %58 : vector<8x32xf32>
    %61 = arith.mulf %55, %60 : vector<8x32xf32>
    %62 = arith.truncf %61 : vector<8x32xf32> to vector<8x32xbf16>
    %c0_30 = arith.constant 0 : index
    %c0_31 = arith.constant 0 : index
    %63 = vector.load %arg9[%c0_30, %c0_31] : memref<32x8xbf16, #tpu.memory_space<vmem>>, vector<32x8xbf16>
    %cst_32 = arith.constant dense<0.000000e+00> : vector<8x8xf32>
    %64 = tpu.matmul %62, %63, %cst_32 {dimension_numbers = #tpu.dot_dimension_numbers<[1], [0], [0], [1], [0, 0, 1, 1], [], []>} : vector<8x32xbf16>, vector<32x8xbf16>, vector<8x8xf32> -> vector<8x8xf32>
    %c0_33 = arith.constant 0 : index
    %c0_34 = arith.constant 0 : index
    %65 = vector.load %arg10[%c0_33, %c0_34] : memref<1x8xf32, #tpu.memory_space<vmem>>, vector<1x8xf32>
    %66 = vector.broadcast %65 : vector<1x8xf32> to vector<8x8xf32>
    %67 = arith.addf %64, %66 : vector<8x8xf32>
    %68 = vector.shape_cast %67 : vector<8x8xf32> to vector<1x8x8xf32>
    %69 = tpu.iota {dimensions = array<i32: 2>} : vector<1x1x8xi32>
    %c4_i32 = arith.constant 4 : i32
    %70 = vector.broadcast %c4_i32 : i32 to vector<1x1x8xi32>
    %71 = arith.cmpi eq, %69, %70 : vector<1x1x8xi32>
    %72 = vector.extract_strided_slice %28 {offsets = [0, 0], sizes = [1, 1], strides = [1, 1]} : vector<1x2xf32> to vector<1x1xf32>
    %73 = vector.shape_cast %72 : vector<1x1xf32> to vector<1x1x1xf32>
    %cst_35 = arith.constant 0.000000e+00 : f32
    %74 = vector.shape_cast %73 : vector<1x1x1xf32> to vector<1x1x1xf32>
    %75 = vector.broadcast %74 : vector<1x1x1xf32> to vector<1x1x8xf32>
    %76 = vector.broadcast %cst_35 : f32 to vector<1x1x8xf32>
    %77 = arith.select %71, %75, %76 : vector<1x1x8xi1>, vector<1x1x8xf32>
    %c5_i32 = arith.constant 5 : i32
    %78 = vector.broadcast %c5_i32 : i32 to vector<1x1x8xi32>
    %79 = arith.cmpi eq, %69, %78 : vector<1x1x8xi32>
    %80 = vector.extract_strided_slice %28 {offsets = [0, 1], sizes = [1, 1], strides = [1, 1]} : vector<1x2xf32> to vector<1x1xf32>
    %81 = vector.shape_cast %80 : vector<1x1xf32> to vector<1x1x1xf32>
    %cst_36 = arith.constant 0.000000e+00 : f32
    %82 = vector.shape_cast %81 : vector<1x1x1xf32> to vector<1x1x1xf32>
    %83 = vector.broadcast %82 : vector<1x1x1xf32> to vector<1x1x8xf32>
    %84 = vector.broadcast %cst_36 : f32 to vector<1x1x8xf32>
    %85 = arith.select %79, %83, %84 : vector<1x1x8xi1>, vector<1x1x8xf32>
    %86 = arith.addf %77, %85 : vector<1x1x8xf32>
    %87 = vector.broadcast %86 : vector<1x1x8xf32> to vector<1x8x8xf32>
    %88 = arith.addf %68, %87 : vector<1x8x8xf32>
    %c0_37 = arith.constant 0 : index
    %c0_38 = arith.constant 0 : index
    %c0_39 = arith.constant 0 : index
    %89 = vector.load %arg11[%c0_37, %c0_38, %c0_39] : memref<1x8x8xf32, #tpu.memory_space<vmem>>, vector<1x8x8xf32>
    tpu.vector_store %arg11[%c0_37, %c0_38, %c0_39], %88 {strides = array<i32>} : memref<1x8x8xf32, #tpu.memory_space<vmem>>, vector<1x8x8xf32>,
    return
  }
  func.func @transform_0(%arg0: i32) -> (i32, i32, i32) {
    %c0_i32 = arith.constant 0 : i32
    %c0_i32_0 = arith.constant 0 : i32
    %c0_i32_1 = arith.constant 0 : i32
    return %arg0, %c0_i32, %c0_i32_0 : i32, i32, i32
  }
  func.func @transform_1(%arg0: i32) -> (i32, i32, i32) {
    %c0_i32 = arith.constant 0 : i32
    %c0_i32_0 = arith.constant 0 : i32
    %c0_i32_1 = arith.constant 0 : i32
    return %arg0, %c0_i32, %c0_i32_0 : i32, i32, i32
  }
  func.func @transform_2(%arg0: i32) -> (i32, i32) {
    %c0_i32 = arith.constant 0 : i32
    %c0_i32_0 = arith.constant 0 : i32
    %c0_i32_1 = arith.constant 0 : i32
    return %c0_i32, %c0_i32_0 : i32, i32
  }
  func.func @transform_3(%arg0: i32) -> (i32, i32) {
    %c0_i32 = arith.constant 0 : i32
    %c0_i32_0 = arith.constant 0 : i32
    %c0_i32_1 = arith.constant 0 : i32
    return %c0_i32, %c0_i32_0 : i32, i32
  }
  func.func @transform_4(%arg0: i32) -> (i32, i32) {
    %c0_i32 = arith.constant 0 : i32
    %c0_i32_0 = arith.constant 0 : i32
    %c0_i32_1 = arith.constant 0 : i32
    return %c0_i32, %c0_i32_0 : i32, i32
  }
  func.func @transform_5(%arg0: i32) -> (i32, i32) {
    %c0_i32 = arith.constant 0 : i32
    %c0_i32_0 = arith.constant 0 : i32
    %c0_i32_1 = arith.constant 0 : i32
    return %c0_i32, %c0_i32_0 : i32, i32
  }
  func.func @transform_6(%arg0: i32) -> (i32, i32) {
    %c0_i32 = arith.constant 0 : i32
    %c0_i32_0 = arith.constant 0 : i32
    %c0_i32_1 = arith.constant 0 : i32
    return %c0_i32, %c0_i32_0 : i32, i32
  }
  func.func @transform_7(%arg0: i32) -> (i32, i32) {
    %c0_i32 = arith.constant 0 : i32
    %c0_i32_0 = arith.constant 0 : i32
    %c0_i32_1 = arith.constant 0 : i32
    return %c0_i32, %c0_i32_0 : i32, i32
  }
  func.func @transform_8(%arg0: i32) -> (i32, i32) {
    %c0_i32 = arith.constant 0 : i32
    %c0_i32_0 = arith.constant 0 : i32
    %c0_i32_1 = arith.constant 0 : i32
    return %c0_i32, %c0_i32_0 : i32, i32
  }
  func.func @transform_9(%arg0: i32) -> (i32, i32) {
    %c0_i32 = arith.constant 0 : i32
    %c0_i32_0 = arith.constant 0 : i32
    %c0_i32_1 = arith.constant 0 : i32
    return %c0_i32, %c0_i32_0 : i32, i32
  }
  func.func @transform_10(%arg0: i32) -> (i32, i32, i32) {
    %c0_i32 = arith.constant 0 : i32
    %c0_i32_0 = arith.constant 0 : i32
    %c0_i32_1 = arith.constant 0 : i32
    return %arg0, %c0_i32, %c0_i32_0 : i32, i32, i32
  }
}

</mosaic_0001>

<llo_original>
// kernel: tweet_model_forward.1
$region0: #{tweet_model_forward.1}
  #allocation0 [shape = 'u32[]', space=smem, size = 0x4, offset = 0x4, fixed_abs, tag = 'smem constant byte address 0x4 - core index']
  #allocation1 [shape = 'u32[144,128]{1,0:T(1,128)}', space=vmem, size = 0x12000, scoped, tag = 'internal scratch']
  %s0 = inlined_call_operand.vmem [shape: f32[2,8,1], index: 0, kind: input, shape index: {}]
  %s1 = inlined_call_operand.vmem [shape: bf16[2,8,96], index: 1, kind: input, shape index: {}]
  %s2 = inlined_call_operand.vmem [shape: f32[96,256], index: 2, kind: input, shape index: {}]
  %s3 = inlined_call_operand.vmem [shape: f32[1,256], index: 3, kind: input, shape index: {}]
  %s4 = inlined_call_operand.vmem [shape: f32[256,2], index: 4, kind: input, shape index: {}]
  %s5 = inlined_call_operand.vmem [shape: f32[1,2], index: 5, kind: input, shape index: {}]
  %s6 = inlined_call_operand.vmem [shape: bf16[96,96], index: 6, kind: input, shape index: {}]
  %s7 = inlined_call_operand.vmem [shape: f32[1,32], index: 7, kind: input, shape index: {}]
  %s8 = inlined_call_operand.vmem [shape: bf16[32,8], index: 8, kind: input, shape index: {}]
  %s9 = inlined_call_operand.vmem [shape: f32[1,8], index: 9, kind: input, shape index: {}]
  %s10 = inlined_call_operand.vmem [shape: f32[2,8,8], index: 10, kind: output, shape index: {}]
  %s11 = sld [smem:[#allocation0]]
  $region73: #{tweet_model_forward.1} parent=0
    _
  %s13 = ssub.s32 1, %s11
  %s14 = scalar_select 0, %s13, %s11
  loop: start=0, step=1, limit=4
  $region2: #{tweet_model_forward.1} parent=0 // loop_pre_header
    _
  $region3: #{tweet_model_forward.1} parent=0 // loop_header
    %s16 = sphi 0, %s20
    %p17 = scmp.ge.s32.totalorder %s16, 4
    %s26 = sphi 0, %s28
    %s29 = sphi 0, %s26
    %s30 = sphi 0, %s29
    %s46 = sphi 0, %s30
    %s52 = sphi 0, %s54
    %s55 = sphi 0, %s52
    %s56 = sphi 0, %s55
    %s72 = sphi 0, %s56
    %s76 = sphi 0, %s76
    %s78 = sphi 0, %s76
    %s79 = sphi 0, %s78
    %s93 = sphi 0, %s79
    %s97 = sphi 0, %s97
    %s99 = sphi 0, %s97
    %s100 = sphi 0, %s99
    %s114 = sphi 0, %s100
    %s118 = sphi 0, %s118
    %s120 = sphi 0, %s118
    %s121 = sphi 0, %s120
    %s135 = sphi 0, %s121
    %s139 = sphi 0, %s139
    %s141 = sphi 0, %s139
    %s142 = sphi 0, %s141
    %s156 = sphi 0, %s142
    %s160 = sphi 0, %s160
    %s162 = sphi 0, %s160
    %s163 = sphi 0, %s162
    %s177 = sphi 0, %s163
    %s181 = sphi 0, %s181
    %s183 = sphi 0, %s181
    %s184 = sphi 0, %s183
    %s198 = sphi 0, %s184
    %s202 = sphi 0, %s202
    %s204 = sphi 0, %s202
    %s205 = sphi 0, %s204
    %s219 = sphi 0, %s205
    %s223 = sphi 0, %s223
    %s225 = sphi 0, %s223
    %s226 = sphi 0, %s225
    %s240 = sphi 0, %s226
    %s246 = sphi 0, %s248
    %s249 = sphi 0, %s246
    %s250 = sphi 0, %s249
    %s266 = sphi 0, %s250
  $region4: #{tweet_model_forward.1} parent=0 // loop_header_branch
    %19 = sbr.rel (%p17) target = $region8
  $region5: #{tweet_model_forward.1} parent=0 // loop_body
    %s21 = ssub.s32 %s16, 1
    %s22 = ssub.s32 %s16, 2
    %s23 = sadd.s32 %s16, 1
    %s24 = ssub.s32 %s16, %s23
    %p25 = scmp.eq.s32.totalorder %s24, 0
    %s27 = sadd.s32 %s26, 1
    %s28 = scalar_select %p25, %s26, %s27
    %p31 = pneg %p25
    %p32 = scmp.eq.s32.totalorder %s16, 1
    %p33 = por %p31, %p32
    %p34 = scmp.ne.s32.totalorder %s26, %s29
    %p35 = scmp.eq.s32.totalorder %s16, 0
    %p36 = por %p34, %p35
    %p37 = scmp.ne.s32.totalorder %s26, %s29
    %p38 = scmp.eq.s32.totalorder %s21, 1
    %p39 = por %p37, %p38
    %p40 = scmp.ne.s32.totalorder %s29, %s30
    %p41 = scmp.eq.s32.totalorder %s21, 0
    %p42 = por %p40, %p41
    %p43 = scmp.ne.s32.totalorder %s29, %s30
    %p44 = scmp.eq.s32.totalorder %s22, 1
    %p45 = por %p43, %p44
    %p47 = scmp.ne.s32.totalorder %s30, %s46
    %p48 = scmp.eq.s32.totalorder %s22, 0
    %p49 = por %p47, %p48
    %s50 = ssub.s32 %s16, %s23
    %p51 = scmp.eq.s32.totalorder %s50, 0
    %s53 = sadd.s32 %s52, 1
    %s54 = scalar_select %p51, %s52, %s53
    %p57 = pneg %p51
    %p58 = scmp.eq.s32.totalorder %s16, 1
    %p59 = por %p57, %p58
    %p60 = scmp.ne.s32.totalorder %s52, %s55
    %p61 = scmp.eq.s32.totalorder %s16, 0
    %p62 = por %p60, %p61
    %p63 = scmp.ne.s32.totalorder %s52, %s55
    %p64 = scmp.eq.s32.totalorder %s21, 1
    %p65 = por %p63, %p64
    %p66 = scmp.ne.s32.totalorder %s55, %s56
    %p67 = scmp.eq.s32.totalorder %s21, 0
    %p68 = por %p66, %p67
    %p69 = scmp.ne.s32.totalorder %s55, %s56
    %p70 = scmp.eq.s32.totalorder %s22, 1
    %p71 = por %p69, %p70
    %p73 = scmp.ne.s32.totalorder %s56, %s72
    %p74 = scmp.eq.s32.totalorder %s22, 0
    %p75 = por %p73, %p74
    %s77 = sadd.s32 %s76, 1
    %p80 = scmp.eq.s32.totalorder %s16, 1
    %p81 = scmp.ne.s32.totalorder %s76, %s78
    %p82 = scmp.eq.s32.totalorder %s16, 0
    %p83 = por %p81, %p82
    %p84 = scmp.ne.s32.totalorder %s76, %s78
    %p85 = scmp.eq.s32.totalorder %s21, 1
    %p86 = por %p84, %p85
    %p87 = scmp.ne.s32.totalorder %s78, %s79
    %p88 = scmp.eq.s32.totalorder %s21, 0
    %p89 = por %p87, %p88
    %p90 = scmp.ne.s32.totalorder %s78, %s79
    %p91 = scmp.eq.s32.totalorder %s22, 1
    %p92 = por %p90, %p91
    %p94 = scmp.ne.s32.totalorder %s79, %s93
    %p95 = scmp.eq.s32.totalorder %s22, 0
    %p96 = por %p94, %p95
    %s98 = sadd.s32 %s97, 1
    %p101 = scmp.eq.s32.totalorder %s16, 1
    %p102 = scmp.ne.s32.totalorder %s97, %s99
    %p103 = scmp.eq.s32.totalorder %s16, 0
    %p104 = por %p102, %p103
    %p105 = scmp.ne.s32.totalorder %s97, %s99
    %p106 = scmp.eq.s32.totalorder %s21, 1
    %p107 = por %p105, %p106
    %p108 = scmp.ne.s32.totalorder %s99, %s100
    %p109 = scmp.eq.s32.totalorder %s21, 0
    %p110 = por %p108, %p109
    %p111 = scmp.ne.s32.totalorder %s99, %s100
    %p112 = scmp.eq.s32.totalorder %s22, 1
    %p113 = por %p111, %p112
    %p115 = scmp.ne.s32.totalorder %s100, %s114
    %p116 = scmp.eq.s32.totalorder %s22, 0
    %p117 = por %p115, %p116
    %s119 = sadd.s32 %s118, 1
    %p122 = scmp.eq.s32.totalorder %s16, 1
    %p123 = scmp.ne.s32.totalorder %s118, %s120
    %p124 = scmp.eq.s32.totalorder %s16, 0
    %p125 = por %p123, %p124
    %p126 = scmp.ne.s32.totalorder %s118, %s120
    %p127 = scmp.eq.s32.totalorder %s21, 1
    %p128 = por %p126, %p127
    %p129 = scmp.ne.s32.totalorder %s120, %s121
    %p130 = scmp.eq.s32.totalorder %s21, 0
    %p131 = por %p129, %p130
    %p132 = scmp.ne.s32.totalorder %s120, %s121
    %p133 = scmp.eq.s32.totalorder %s22, 1
    %p134 = por %p132, %p133
    %p136 = scmp.ne.s32.totalorder %s121, %s135
    %p137 = scmp.eq.s32.totalorder %s22, 0
    %p138 = por %p136, %p137
    %s140 = sadd.s32 %s139, 1
    %p143 = scmp.eq.s32.totalorder %s16, 1
    %p144 = scmp.ne.s32.totalorder %s139, %s141
    %p145 = scmp.eq.s32.totalorder %s16, 0
    %p146 = por %p144, %p145
    %p147 = scmp.ne.s32.totalorder %s139, %s141
    %p148 = scmp.eq.s32.totalorder %s21, 1
    %p149 = por %p147, %p148
    %p150 = scmp.ne.s32.totalorder %s141, %s142
    %p151 = scmp.eq.s32.totalorder %s21, 0
    %p152 = por %p150, %p151
    %p153 = scmp.ne.s32.totalorder %s141, %s142
    %p154 = scmp.eq.s32.totalorder %s22, 1
    %p155 = por %p153, %p154
    %p157 = scmp.ne.s32.totalorder %s142, %s156
    %p158 = scmp.eq.s32.totalorder %s22, 0
    %p159 = por %p157, %p158
    %s161 = sadd.s32 %s160, 1
    %p164 = scmp.eq.s32.totalorder %s16, 1
    %p165 = scmp.ne.s32.totalorder %s160, %s162
    %p166 = scmp.eq.s32.totalorder %s16, 0
    %p167 = por %p165, %p166
    %p168 = scmp.ne.s32.totalorder %s160, %s162
    %p169 = scmp.eq.s32.totalorder %s21, 1
    %p170 = por %p168, %p169
    %p171 = scmp.ne.s32.totalorder %s162, %s163
    %p172 = scmp.eq.s32.totalorder %s21, 0
    %p173 = por %p171, %p172
    %p174 = scmp.ne.s32.totalorder %s162, %s163
    %p175 = scmp.eq.s32.totalorder %s22, 1
    %p176 = por %p174, %p175
    %p178 = scmp.ne.s32.totalorder %s163, %s177
    %p179 = scmp.eq.s32.totalorder %s22, 0
    %p180 = por %p178, %p179
    %s182 = sadd.s32 %s181, 1
    %p185 = scmp.eq.s32.totalorder %s16, 1
    %p186 = scmp.ne.s32.totalorder %s181, %s183
    %p187 = scmp.eq.s32.totalorder %s16, 0
    %p188 = por %p186, %p187
    %p189 = scmp.ne.s32.totalorder %s181, %s183
    %p190 = scmp.eq.s32.totalorder %s21, 1
    %p191 = por %p189, %p190
    %p192 = scmp.ne.s32.totalorder %s183, %s184
    %p193 = scmp.eq.s32.totalorder %s21, 0
    %p194 = por %p192, %p193
    %p195 = scmp.ne.s32.totalorder %s183, %s184
    %p196 = scmp.eq.s32.totalorder %s22, 1
    %p197 = por %p195, %p196
    %p199 = scmp.ne.s32.totalorder %s184, %s198
    %p200 = scmp.eq.s32.totalorder %s22, 0
    %p201 = por %p199, %p200
    %s203 = sadd.s32 %s202, 1
    %p206 = scmp.eq.s32.totalorder %s16, 1
    %p207 = scmp.ne.s32.totalorder %s202, %s204
    %p208 = scmp.eq.s32.totalorder %s16, 0
    %p209 = por %p207, %p208
    %p210 = scmp.ne.s32.totalorder %s202, %s204
    %p211 = scmp.eq.s32.totalorder %s21, 1
    %p212 = por %p210, %p211
    %p213 = scmp.ne.s32.totalorder %s204, %s205
    %p214 = scmp.eq.s32.totalorder %s21, 0
    %p215 = por %p213, %p214
    %p216 = scmp.ne.s32.totalorder %s204, %s205
    %p217 = scmp.eq.s32.totalorder %s22, 1
    %p218 = por %p216, %p217
    %p220 = scmp.ne.s32.totalorder %s205, %s219
    %p221 = scmp.eq.s32.totalorder %s22, 0
    %p222 = por %p220, %p221
    %s224 = sadd.s32 %s223, 1
    %p227 = scmp.eq.s32.totalorder %s16, 1
    %p228 = scmp.ne.s32.totalorder %s223, %s225
    %p229 = scmp.eq.s32.totalorder %s16, 0
    %p230 = por %p228, %p229
    %p231 = scmp.ne.s32.totalorder %s223, %s225
    %p232 = scmp.eq.s32.totalorder %s21, 1
    %p233 = por %p231, %p232
    %p234 = scmp.ne.s32.totalorder %s225, %s226
    %p235 = scmp.eq.s32.totalorder %s21, 0
    %p236 = por %p234, %p235
    %p237 = scmp.ne.s32.totalorder %s225, %s226
    %p238 = scmp.eq.s32.totalorder %s22, 1
    %p239 = por %p237, %p238
    %p241 = scmp.ne.s32.totalorder %s226, %s240
    %p242 = scmp.eq.s32.totalorder %s22, 0
    %p243 = por %p241, %p242
    %s244 = ssub.s32 %s16, %s23
    %p245 = scmp.eq.s32.totalorder %s244, 0
    %s247 = sadd.s32 %s246, 1
    %s248 = scalar_select %p245, %s246, %s247
    %p251 = pneg %p245
    %p252 = scmp.eq.s32.totalorder %s16, 1
    %p253 = por %p251, %p252
    %p254 = scmp.ne.s32.totalorder %s246, %s249
    %p255 = scmp.eq.s32.totalorder %s16, 0
    %p256 = por %p254, %p255
    %p257 = scmp.ne.s32.totalorder %s246, %s249
    %p258 = scmp.eq.s32.totalorder %s21, 1
    %p259 = por %p257, %p258
    %p260 = scmp.ne.s32.totalorder %s249, %s250
    %p261 = scmp.eq.s32.totalorder %s21, 0
    %p262 = por %p260, %p261
    %p263 = scmp.ne.s32.totalorder %s249, %s250
    %p264 = scmp.eq.s32.totalorder %s22, 1
    %p265 = por %p263, %p264
    %p267 = scmp.ne.s32.totalorder %s250, %s266
    %p268 = scmp.eq.s32.totalorder %s22, 0
    %p269 = por %p267, %p268
    %p270 = scmp.le.s32.totalorder 1, %s16
    %p271 = scmp.lt.s32.totalorder %s16, 3
    %p272 = pnand %p270, %p271
    %p273 = pneg %p272
    // Predicated region
    $region9: #{tweet_model_forward.1} parent=5 // pred_check
      _
    $region10: #{tweet_model_forward.1} parent=5 // pred_check_branch
      %275 = sbr.rel (%p272) target = $region12
    $region11: #{tweet_model_forward.1} parent=5 // pred_region
      %s276 = ssub.s32 %s16, 1
      // Predicated region
      $region13: #{tweet_model_forward.1} parent=11 // pred_check
        %p277 = pneg %p89
      $region14: #{tweet_model_forward.1} parent=11 // pred_check_branch
        %279 = sbr.rel (%p277) target = $region16
      $region15: #{tweet_model_forward.1} parent=11 // pred_region
        _
      $region16: #{tweet_model_forward.1} parent=11 // pred_fallthru
        _
      // Predicated region
      $region17: #{tweet_model_forward.1} parent=11 // pred_check
        %p280 = pneg %p110
      $region18: #{tweet_model_forward.1} parent=11 // pred_check_branch
        %282 = sbr.rel (%p280) target = $region20
      $region19: #{tweet_model_forward.1} parent=11 // pred_region
        _
      $region20: #{tweet_model_forward.1} parent=11 // pred_fallthru
        _
      // Predicated region
      $region21: #{tweet_model_forward.1} parent=11 // pred_check
        %p283 = pneg %p131
      $region22: #{tweet_model_forward.1} parent=11 // pred_check_branch
        %285 = sbr.rel (%p283) target = $region24
      $region23: #{tweet_model_forward.1} parent=11 // pred_region
        _
      $region24: #{tweet_model_forward.1} parent=11 // pred_fallthru
        _
      // Predicated region
      $region25: #{tweet_model_forward.1} parent=11 // pred_check
        %p286 = pneg %p152
      $region26: #{tweet_model_forward.1} parent=11 // pred_check_branch
        %288 = sbr.rel (%p286) target = $region28
      $region27: #{tweet_model_forward.1} parent=11 // pred_region
        _
      $region28: #{tweet_model_forward.1} parent=11 // pred_fallthru
        _
      // Predicated region
      $region29: #{tweet_model_forward.1} parent=11 // pred_check
        %p289 = pneg %p173
      $region30: #{tweet_model_forward.1} parent=11 // pred_check_branch
        %291 = sbr.rel (%p289) target = $region32
      $region31: #{tweet_model_forward.1} parent=11 // pred_region
        _
      $region32: #{tweet_model_forward.1} parent=11 // pred_fallthru
        _
      // Predicated region
      $region33: #{tweet_model_forward.1} parent=11 // pred_check
        %p292 = pneg %p194
      $region34: #{tweet_model_forward.1} parent=11 // pred_check_branch
        %294 = sbr.rel (%p292) target = $region36
      $region35: #{tweet_model_forward.1} parent=11 // pred_region
        _
      $region36: #{tweet_model_forward.1} parent=11 // pred_fallthru
        _
      // Predicated region
      $region37: #{tweet_model_forward.1} parent=11 // pred_check
        %p295 = pneg %p215
      $region38: #{tweet_model_forward.1} parent=11 // pred_check_branch
        %297 = sbr.rel (%p295) target = $region40
      $region39: #{tweet_model_forward.1} parent=11 // pred_region
        _
      $region40: #{tweet_model_forward.1} parent=11 // pred_fallthru
        _
      // Predicated region
      $region41: #{tweet_model_forward.1} parent=11 // pred_check
        %p298 = pneg %p236
      $region42: #{tweet_model_forward.1} parent=11 // pred_check_branch
        %300 = sbr.rel (%p298) target = $region44
      $region43: #{tweet_model_forward.1} parent=11 // pred_region
        _
      $region44: #{tweet_model_forward.1} parent=11 // pred_fallthru
        _
    $region12: #{tweet_model_forward.1} parent=5 // pred_fallthru
      _
    %p301 = scmp.lt.s32.totalorder %s16, 2
    // Predicated region
    $region45: #{tweet_model_forward.1} parent=5 // pred_check
      %p302 = pneg %p301
    $region46: #{tweet_model_forward.1} parent=5 // pred_check_branch
      %304 = sbr.rel (%p302) target = $region48
    $region47: #{tweet_model_forward.1} parent=5 // pred_region
      // Predicated region
      $region49: #{tweet_model_forward.1} parent=47 // pred_check
        %p305 = pneg %p36
      $region50: #{tweet_model_forward.1} parent=47 // pred_check_branch
        %307 = sbr.rel (%p305) target = $region52
      $region51: #{tweet_model_forward.1} parent=47 // pred_region
        %p308 = scmp.lt.s32.totalorder %s16, 1
        %s309 = scalar_select %p308, %s16, 1
        %s310 = smul.addr %s309, 8
        %s311 = scalar_lea.vmem %s0, %s310
      $region52: #{tweet_model_forward.1} parent=47 // pred_fallthru
        _
      // Predicated region
      $region53: #{tweet_model_forward.1} parent=47 // pred_check
        %p312 = pneg %p62
      $region54: #{tweet_model_forward.1} parent=47 // pred_check_branch
        %314 = sbr.rel (%p312) target = $region56
      $region55: #{tweet_model_forward.1} parent=47 // pred_region
        %p315 = scmp.lt.s32.totalorder %s16, 1
        %s316 = scalar_select %p315, %s16, 1
        %s317 = smul.addr %s316, 4
        %s318 = scalar_lea.vmem %s1, %s317
      $region56: #{tweet_model_forward.1} parent=47 // pred_fallthru
        _
    $region48: #{tweet_model_forward.1} parent=5 // pred_fallthru
      _
    %p319 = scmp.le.s32.totalorder 1, %s16
    %p320 = scmp.lt.s32.totalorder %s16, 3
    %p321 = pnand %p319, %p320
    %p322 = pneg %p321
    // Predicated region
    $region57: #{tweet_model_forward.1} parent=5 // pred_check
      _
    $region58: #{tweet_model_forward.1} parent=5 // pred_check_branch
      %324 = sbr.rel (%p321) target = $region60
    $region59: #{tweet_model_forward.1} parent=5 // pred_region
      %s325 = ssub.s32 %s16, 1
      %p326 = scmp.lt.s32.totalorder %s21, 1
      %s327 = scalar_select %p326, %s21, 1
      %s328 = smul.addr %s327, 8
      %s329 = scalar_lea.vmem %s0, %s328
      %p330 = pneg %p42
      %p331 = pneg %p39
      %p332 = scmp.lt.s32.totalorder %s21, 1
      %s333 = scalar_select %p332, %s21, 1
      %s334 = smul.addr %s333, 4
      %s335 = scalar_lea.vmem %s1, %s334
      %p336 = pneg %p68
      %p337 = pneg %p65
      %p338 = pneg %p89
      %p339 = pneg %p86
      %p340 = pneg %p110
      %p341 = pneg %p107
      %p342 = pneg %p131
      %p343 = pneg %p128
      %p344 = pneg %p152
      %p345 = pneg %p149
      %p346 = pneg %p173
      %p347 = pneg %p170
      %p348 = pneg %p194
      %p349 = pneg %p191
      %p350 = pneg %p215
      %p351 = pneg %p212
      %p352 = pneg %p236
      %p353 = pneg %p233
      %p354 = pneg %p262
      %p355 = pneg %p259
      %p356 = scmp.lt.s32.totalorder %s21, 1
      %s357 = scalar_select %p356, %s21, 1
      %s358 = smul.addr %s357, 8
      %s359 = scalar_lea.vmem %s10, %s358
      %p360 = scmp.lt.s32.totalorder %s21, 1
      %s361 = scalar_select %p360, %s21, 1
      %s362 = smul.addr %s361, 8
      %s363 = scalar_lea.vmem %s0, %s362
      %p364 = scmp.lt.s32.totalorder %s21, 1
      %s365 = scalar_select %p364, %s21, 1
      %s366 = smul.addr %s365, 4
      %s367 = scalar_lea.vmem %s1, %s366
      %p368 = scmp.lt.s32.totalorder %s21, 1
      %s369 = scalar_select %p368, %s21, 1
      %s370 = smul.addr %s369, 8
      %s371 = scalar_lea.vmem %s10, %s370
      %v373 = vld [vmem:[%s367] sm:$0xf]
      %v374 = vld [vmem:[%s363] sm:$0xff]
      %v375 = vunpack.c.l.bf16 %v373
      %377 = vset.pattern.permute.xlu0 0
      %378 = vperm.xlu0 %377, %v374
      %v379 = vpop.permute.xlu0 %378
      %v381 = vmul.f32 %v375, %v379
      %vm382 = vcmask 785408
      %v383 = vsel %vm382, %v381, 0.0
      %v384 = vrot.slane %v383, 4
      %v385 = vadd.f32 %v383, %v384
      %v386 = vrot.slane %v385, 2
      %v387 = vadd.f32 %v385, %v386
      %v388 = vrot.slane %v387, 1
      %v389 = vadd.f32 %v387, %v388
      %vm390 = vcmask 7168
      %v391 = vsel %vm390, %v374, 0.0
      %v392 = vrot.slane %v391, 4
      %v393 = vadd.f32 %v391, %v392
      %v394 = vrot.slane %v393, 2
      %v395 = vadd.f32 %v393, %v394
      %v396 = vrot.slane %v395, 1
      %v397 = vadd.f32 %v395, %v396
      %399 = vset.pattern.permute.xlu0 0
      %400 = vperm.xlu0 %399, %v397
      %v401 = vpop.permute.xlu0 %400
      %v403 = vrcp.pop %v401
      %v404 = vmul.f32 %v389, %v403
      %v405 = vld [vmem:[%s2] sm:$0xff]
      %v406 = vld [vmem:[%s2 + $0x8] sm:$0xff]
      %v407 = vld [vmem:[%s2 + $0x10] sm:$0xff]
      %v408 = vld [vmem:[%s2 + $0x18] sm:$0xff]
      %v409 = vld [vmem:[%s2 + $0x20] sm:$0xff]
      %v410 = vld [vmem:[%s2 + $0x28] sm:$0xff]
      %v411 = vld [vmem:[%s2 + $0x30] sm:$0xff]
      %v412 = vld [vmem:[%s2 + $0x38] sm:$0xff]
      %v413 = vld [vmem:[%s2 + $0x40] sm:$0xff]
      %v414 = vld [vmem:[%s2 + $0x48] sm:$0xff]
      %v415 = vld [vmem:[%s2 + $0x50] sm:$0xff]
      %v416 = vld [vmem:[%s2 + $0x58] sm:$0xff]
      %v417 = vld [vmem:[%s2 + $0x60] sm:$0xff]
      %v418 = vld [vmem:[%s2 + $0x68] sm:$0xff]
      %v419 = vld [vmem:[%s2 + $0x70] sm:$0xff]
      %v420 = vld [vmem:[%s2 + $0x78] sm:$0xff]
      %v421 = vld [vmem:[%s2 + $0x80] sm:$0xff]
      %v422 = vld [vmem:[%s2 + $0x88] sm:$0xff]
      %v423 = vld [vmem:[%s2 + $0x90] sm:$0xff]
      %v424 = vld [vmem:[%s2 + $0x98] sm:$0xff]
      %v425 = vld [vmem:[%s2 + $0xa0] sm:$0xff]
      %v426 = vld [vmem:[%s2 + $0xa8] sm:$0xff]
      %v427 = vld [vmem:[%s2 + $0xb0] sm:$0xff]
      %v428 = vld [vmem:[%s2 + $0xb8] sm:$0xff]
      %v429 = vld [vmem:[%s3] sm:$0x3]
      %v431 = vlaneseq
      %v432 = vshrl.u32 %v431, 7
      %v433 = vsub.s32 0, %v432
      %v434 = vrot.slane %v429, %v433
      %v435 = vlaneseq
      %v436 = vshrl.u32 %v435, 7
      %v437 = vsub.s32 1, %v436
      %v438 = vrot.slane %v429, %v437
      %v442 = vsel %vm382, %v404, 0
      %444 = vmatprep.subr.mxu0 0.0
      %445 = vmatpush1.msra.mxu0 0.0
      %446 = vmatprep.subr.mxu0 0.0
      %447 = vmatpush1.msra.mxu0 0.0
      %448 = vmatprep.subr.mxu0 0.0
      %449 = vmatpush1.msra.mxu0 0.0
      %450 = vmatprep.subr.mxu0 0.0
      %451 = vmatpush1.msra.mxu0 0.0
      %452 = vmatprep.subr.mxu0 %v428
      %453 = vmatpush1.msra.mxu0 %v427
      %454 = vmatprep.subr.mxu0 %v426
      %455 = vmatpush1.msra.mxu0 %v425
      %456 = vmatprep.subr.mxu0 %v424
      %457 = vmatpush1.msra.mxu0 %v423
      %458 = vmatprep.subr.mxu0 %v422
      %459 = vmatpush1.msra.mxu0 %v421
      %460 = vmatprep.subr.mxu0 %v420
      %461 = vmatpush1.msra.mxu0 %v419
      %462 = vmatprep.subr.mxu0 %v418
      %463 = vmatpush1.msra.mxu0 %v417
      %464 = vmatprep.subr.mxu0 %v416
      %465 = vmatpush1.msra.mxu0 %v415
      %466 = vmatprep.subr.mxu0 %v414
      %467 = vmatpush1.msra.mxu0 %v413
      %468 = vmatprep.subr.mxu0 %v412
      %469 = vmatpush1.msra.mxu0 %v411
      %470 = vmatprep.subr.mxu0 %v410
      %471 = vmatpush1.msra.mxu0 %v409
      %472 = vmatprep.subr.mxu0 %v408
      %473 = vmatpush1.msra.mxu0 %v407
      %474 = vmatprep.subr.mxu0 %v406
      %475 = vmatpush1.msra.mxu0 %v405
      %476 = vmatprep.subr.mxu0 0.0
      %477 = vmatpush2.msra.mxu0 0.0
      %478 = vmatprep.subr.mxu0 0.0
      %479 = vmatpush2.msra.mxu0 0.0
      %480 = vmatprep.subr.mxu0 0.0
      %481 = vmatpush2.msra.mxu0 0.0
      %482 = vmatprep.subr.mxu0 0.0
      %483 = vmatpush2.msra.mxu0 0.0
      %484 = vmatprep.subr.mxu0 0.0
      %485 = vmatpush2.msra.mxu0 0.0
      %486 = vmatprep.subr.mxu0 0.0
      %487 = vmatpush2.msra.mxu0 0.0
      %488 = vmatprep.subr.mxu0 0.0
      %489 = vmatpush2.msra.mxu0 0.0
      %490 = vmatprep.subr.mxu0 0.0
      %491 = vmatpush2.msra.mxu0 0.0
      %492 = vmatprep.subr.mxu0 0.0
      %493 = vmatpush2.msra.mxu0 0.0
      %494 = vmatprep.subr.mxu0 0.0
      %495 = vmatpush2.msra.mxu0 0.0
      %496 = vmatprep.subr.mxu0 0.0
      %497 = vmatpush2.msra.mxu0 0.0
      %498 = vmatprep.subr.mxu0 0.0
      %499 = vmatpush2.msra.mxu0 0.0
      %500 = vmatprep.subr.mxu0 0.0
      %501 = vmatpush2.msra.mxu0 0.0
      %502 = vmatprep.subr.mxu0 0.0
      %503 = vmatpush2.msra.mxu0 0.0
      %504 = vmatprep.subr.mxu0 0.0
      %505 = vmatpush2.msra.mxu0 0.0
      %506 = vmatprep.subr.mxu0 0.0
      %507 = vmatpush2.msra.mxu0 0.0
      %508 = vmatprep.mubr.f32.mxu0 0.0
      %509 = vmatmul.mubr.f32.gmra.mxu0 %v442
      %v510 = vpop.f32.mrf.mxu0
      %v511 = vadd.f32 %v434, %v510
      %v512 = vpop.f32.mrf.mxu0
      %v513 = vadd.f32 %v438, %v512
      %514 = vdwg.mxu0
      %v515 = vmul.f32 %v511, 0.5
      %v516 = vmul.f32 %v513, 0.5
      %v517 = vrcp.pop 1.4142135
      %v518 = vmul.f32 %v511, %v517
      %v519 = vmul.f32 %v513, %v517
      %v520 = verf.f32.pop %v518
      %v521 = verf.f32.pop %v519
      %v522 = vadd.f32 %v520, 1.0
      %v523 = vadd.f32 %v521, 1.0
      %v524 = vmul.f32 %v515, %v522
      %v525 = vmul.f32 %v516, %v523
      %v526 = vld [vmem:[%s4] sm:$0xff]
      %v527 = vld [vmem:[%s4 + $0x8] sm:$0xff]
      %v528 = vld [vmem:[%s4 + $0x10] sm:$0xff]
      %v529 = vld [vmem:[%s4 + $0x18] sm:$0xff]
      %v530 = vld [vmem:[%s4 + $0x20] sm:$0xff]
      %v531 = vld [vmem:[%s4 + $0x28] sm:$0xff]
      %v532 = vld [vmem:[%s4 + $0x30] sm:$0xff]
      %v533 = vld [vmem:[%s4 + $0x38] sm:$0xff]
      %v534 = vld [vmem:[%s4 + $0x40] sm:$0xff]
      %v535 = vld [vmem:[%s4 + $0x48] sm:$0xff]
      %v536 = vld [vmem:[%s4 + $0x50] sm:$0xff]
      %v537 = vld [vmem:[%s4 + $0x58] sm:$0xff]
      %v538 = vld [vmem:[%s4 + $0x60] sm:$0xff]
      %v539 = vld [vmem:[%s4 + $0x68] sm:$0xff]
      %v540 = vld [vmem:[%s4 + $0x70] sm:$0xff]
      %v541 = vld [vmem:[%s4 + $0x78] sm:$0xff]
      %v542 = vld [vmem:[%s4 + $0x80] sm:$0xff]
      %v543 = vld [vmem:[%s4 + $0x88] sm:$0xff]
      %v544 = vld [vmem:[%s4 + $0x90] sm:$0xff]
      %v545 = vld [vmem:[%s4 + $0x98] sm:$0xff]
      %v546 = vld [vmem:[%s4 + $0xa0] sm:$0xff]
      %v547 = vld [vmem:[%s4 + $0xa8] sm:$0xff]
      %v548 = vld [vmem:[%s4 + $0xb0] sm:$0xff]
      %v549 = vld [vmem:[%s4 + $0xb8] sm:$0xff]
      %v550 = vld [vmem:[%s4 + $0xc0] sm:$0xff]
      %v551 = vld [vmem:[%s4 + $0xc8] sm:$0xff]
      %v552 = vld [vmem:[%s4 + $0xd0] sm:$0xff]
      %v553 = vld [vmem:[%s4 + $0xd8] sm:$0xff]
      %v554 = vld [vmem:[%s4 + $0xe0] sm:$0xff]
      %v555 = vld [vmem:[%s4 + $0xe8] sm:$0xff]
      %v556 = vld [vmem:[%s4 + $0xf0] sm:$0xff]
      %v557 = vld [vmem:[%s4 + $0xf8] sm:$0xff]
      %v558 = vld [vmem:[%s5] sm:$0x1]
      %559 = vmatprep.subr.mxu0 0.0
      %560 = vmatpush1.msra.mxu0 %v541
      %561 = vmatprep.subr.mxu0 0.0
      %562 = vmatpush1.msra.mxu0 %v540
      %563 = vmatprep.subr.mxu0 0.0
      %564 = vmatpush1.msra.mxu0 %v539
      %565 = vmatprep.subr.mxu0 0.0
      %566 = vmatpush1.msra.mxu0 %v538
      %567 = vmatprep.subr.mxu0 0.0
      %568 = vmatpush1.msra.mxu0 %v537
      %569 = vmatprep.subr.mxu0 0.0
      %570 = vmatpush1.msra.mxu0 %v536
      %571 = vmatprep.subr.mxu0 0.0
      %572 = vmatpush1.msra.mxu0 %v535
      %573 = vmatprep.subr.mxu0 0.0
      %574 = vmatpush1.msra.mxu0 %v534
      %575 = vmatprep.subr.mxu0 0.0
      %576 = vmatpush1.msra.mxu0 %v533
      %577 = vmatprep.subr.mxu0 0.0
      %578 = vmatpush1.msra.mxu0 %v532
      %579 = vmatprep.subr.mxu0 0.0
      %580 = vmatpush1.msra.mxu0 %v531
      %581 = vmatprep.subr.mxu0 0.0
      %582 = vmatpush1.msra.mxu0 %v530
      %583 = vmatprep.subr.mxu0 0.0
      %584 = vmatpush1.msra.mxu0 %v529
      %585 = vmatprep.subr.mxu0 0.0
      %586 = vmatpush1.msra.mxu0 %v528
      %587 = vmatprep.subr.mxu0 0.0
      %588 = vmatpush1.msra.mxu0 %v527
      %589 = vmatprep.subr.mxu0 0.0
      %590 = vmatpush1.msra.mxu0 %v526
      %591 = vmatprep.subr.mxu0 0.0
      %592 = vmatpush2.msra.mxu0 %v557
      %593 = vmatprep.subr.mxu0 0.0
      %594 = vmatpush2.msra.mxu0 %v556
      %595 = vmatprep.subr.mxu0 0.0
      %596 = vmatpush2.msra.mxu0 %v555
      %597 = vmatprep.subr.mxu0 0.0
      %598 = vmatpush2.msra.mxu0 %v554
      %599 = vmatprep.subr.mxu0 0.0
      %600 = vmatpush2.msra.mxu0 %v553
      %601 = vmatprep.subr.mxu0 0.0
      %602 = vmatpush2.msra.mxu0 %v552
      %603 = vmatprep.subr.mxu0 0.0
      %604 = vmatpush2.msra.mxu0 %v551
      %605 = vmatprep.subr.mxu0 0.0
      %606 = vmatpush2.msra.mxu0 %v550
      %607 = vmatprep.subr.mxu0 0.0
      %608 = vmatpush2.msra.mxu0 %v549
      %609 = vmatprep.subr.mxu0 0.0
      %610 = vmatpush2.msra.mxu0 %v548
      %611 = vmatprep.subr.mxu0 0.0
      %612 = vmatpush2.msra.mxu0 %v547
      %613 = vmatprep.subr.mxu0 0.0
      %614 = vmatpush2.msra.mxu0 %v546
      %615 = vmatprep.subr.mxu0 0.0
      %616 = vmatpush2.msra.mxu0 %v545
      %617 = vmatprep.subr.mxu0 0.0
      %618 = vmatpush2.msra.mxu0 %v544
      %619 = vmatprep.subr.mxu0 0.0
      %620 = vmatpush2.msra.mxu0 %v543
      %621 = vmatprep.subr.mxu0 0.0
      %622 = vmatpush2.msra.mxu0 %v542
      %623 = vmatprep.mubr.f32.mxu0 %v525
      %624 = vmatmul.mubr.f32.gmra.mxu0 %v524
      %v625 = vpop.f32.mrf.mxu0
      %v626 = vadd.f32 %v558, %v625
      %v627 = vpop.f32.mrf.mxu0
      %628 = vdwg.mxu0
      %v629 = vld [vmem:[%s6] sm:$0xf]
      %v630 = vld [vmem:[%s6 + $0x4] sm:$0xf]
      %v631 = vld [vmem:[%s6 + $0x8] sm:$0xf]
      %v632 = vld [vmem:[%s6 + $0xc] sm:$0xf]
      %v633 = vld [vmem:[%s6 + $0x10] sm:$0xf]
      %v634 = vld [vmem:[%s6 + $0x14] sm:$0xf]
      %v635 = vld [vmem:[%s6 + $0x18] sm:$0xf]
      %v636 = vld [vmem:[%s6 + $0x1c] sm:$0xf]
      %v637 = vld [vmem:[%s6 + $0x20] sm:$0xf]
      %v638 = vld [vmem:[%s6 + $0x24] sm:$0xf]
      %v639 = vld [vmem:[%s6 + $0x28] sm:$0xf]
      %v640 = vld [vmem:[%s6 + $0x2c] sm:$0xf]
      %v653 = vunpack.c.l.b16 %v629
      %v654 = vunpack.c.l.b16 %v630
      %v655 = vunpack.c.l.b16 %v631
      %v656 = vunpack.c.l.b16 %v632
      %v657 = vunpack.c.l.b16 %v633
      %v658 = vunpack.c.l.b16 %v634
      %v659 = vunpack.c.l.b16 %v635
      %v660 = vunpack.c.l.b16 %v636
      %v661 = vunpack.c.l.b16 %v637
      %v662 = vunpack.c.l.b16 %v638
      %v663 = vunpack.c.l.b16 %v639
      %v664 = vunpack.c.l.b16 %v640
      %v665 = vpack.c.b16 %v654, %v653
      %v666 = vpack.c.b16 %v656, %v655
      %v667 = vpack.c.b16 %v658, %v657
      %v668 = vpack.c.b16 %v660, %v659
      %v669 = vpack.c.b16 %v662, %v661
      %v670 = vpack.c.b16 %v664, %v663
      %v678 = vsel %vm382, %v373, 0
      %680 = vmatprep.subr.bf16.mxu0 0
      %681 = vmatpush1.bf16.msra.mxu0 0
      %682 = vmatprep.subr.bf16.mxu0 0
      %683 = vmatpush1.bf16.msra.mxu0 0
      %684 = vmatprep.subr.bf16.mxu0 0
      %685 = vmatpush1.bf16.msra.mxu0 %v670
      %686 = vmatprep.subr.bf16.mxu0 0
      %687 = vmatpush1.bf16.msra.mxu0 %v669
      %688 = vmatprep.subr.bf16.mxu0 0
      %689 = vmatpush1.bf16.msra.mxu0 %v668
      %690 = vmatprep.subr.bf16.mxu0 0
      %691 = vmatpush1.bf16.msra.mxu0 %v667
      %692 = vmatprep.subr.bf16.mxu0 0
      %693 = vmatpush1.bf16.msra.mxu0 %v666
      %694 = vmatprep.subr.bf16.mxu0 0
      %695 = vmatpush1.bf16.msra.mxu0 %v665
      %696 = vmatprep.subr.bf16.mxu0 0
      %697 = vmatpush2.bf16.msra.mxu0 0
      %698 = vmatprep.subr.bf16.mxu0 0
      %699 = vmatpush2.bf16.msra.mxu0 0
      %700 = vmatprep.subr.bf16.mxu0 0
      %701 = vmatpush2.bf16.msra.mxu0 0
      %702 = vmatprep.subr.bf16.mxu0 0
      %703 = vmatpush2.bf16.msra.mxu0 0
      %704 = vmatprep.subr.bf16.mxu0 0
      %705 = vmatpush2.bf16.msra.mxu0 0
      %706 = vmatprep.subr.bf16.mxu0 0
      %707 = vmatpush2.bf16.msra.mxu0 0
      %708 = vmatprep.subr.bf16.mxu0 0
      %709 = vmatpush2.bf16.msra.mxu0 0
      %710 = vmatprep.subr.bf16.mxu0 0
      %711 = vmatpush2.bf16.msra.mxu0 0
      %712 = vmatprep.mubr.bf16.mxu0 0
      %713 = vmatmul.mubr.bf16.gmra.mxu0 %v678
      %v714 = vpop.f32.mrf.mxu0
      %v715 = vadd.f32 0.0, %v714
      %v716 = vpop.f32.mrf.mxu0
      %v717 = vpop.f32.mrf.mxu0
      %v718 = vpop.f32.mrf.mxu0
      %719 = vdwg.mxu0
      %v720 = vlaneseq
      %v721 = vshrl.u32 %v720, 7
      %vm722 = vcmp.eq.s32.totalorder %v721, 0
      %vm723 = vcmp.eq.s32.totalorder %v721, 7
      %v724 = vld [vmem:[%s7] sm:$0x1]
      %v726 = vlaneseq
      %v727 = vshrl.u32 %v726, 7
      %v728 = vsub.s32 0, %v727
      %v729 = vrot.slane %v724, %v728
      %730 = vrot.lane.b32.xlu0 %v729, 32
      %v731 = vpop.permute.xlu0 %730
      %v733 = vadd.f32 %v715, %v731
      %v734 = vrot.slane %v715, 7
      %v735 = vsel %vm722, 1, 0
      %vm736 = vcmp.eq.s32.totalorder %v735, 1
      %v737 = vsel %vm736, 0.0, %v734
      %739 = vrot.lane.b32.xlu0 %v737, 32
      %v740 = vpop.permute.xlu0 %739
      %v742 = vadd.f32 %v733, %v740
      %744 = vrot.lane.b32.xlu0 %v715, 64
      %v745 = vpop.permute.xlu0 %744
      %v747 = vrot.slane %v745, 1
      %v748 = vsel %vm723, 1, 0
      %vm749 = vcmp.eq.s32.totalorder %v748, 1
      %v750 = vsel %vm749, 0.0, %v747
      %752 = vrot.lane.b32.xlu0 %v750, 32
      %v753 = vpop.permute.xlu0 %752
      %v755 = vadd.f32 %v742, %v753
      %v756 = vmul.f32 %v755, 0.5
      %v757 = vmul.f32 %v755, %v517
      %v758 = verf.f32.pop %v757
      %v759 = vadd.f32 %v758, 1.0
      %v760 = vmul.f32 %v756, %v759
      %v761 = vpack.c.bf16 %v760, %v760
      %v762 = vld [vmem:[%s8] sm:$0xf]
      %v763 = vld [vmem:[%s8 + $0x4] sm:$0xf]
      %v764 = vld [vmem:[%s8 + $0x8] sm:$0xf]
      %v765 = vld [vmem:[%s8 + $0xc] sm:$0xf]
      %v766 = vld [vmem:[%s9] sm:$0x1]
      %v768 = vlaneseq
      %v769 = vshrl.u32 %v768, 7
      %v770 = vsub.s32 0, %v769
      %v771 = vrot.slane %v766, %v770
      %774 = vrot.lane.b32.xlu0 %v761, 96
      %v775 = vpop.permute.xlu0 %774
      %v780 = vunpack.c.l.b16 %v762
      %v781 = vunpack.c.l.b16 %v763
      %v782 = vunpack.c.l.b16 %v764
      %v783 = vunpack.c.l.b16 %v765
      %v784 = vpack.c.b16 %v781, %v780
      %v785 = vpack.c.b16 %v783, %v782
      %vm788 = vcmask 261120
      %v790 = vsel %vm788, %v775, 0
      %792 = vmatprep.subr.bf16.mxu0 0
      %793 = vmatpush1.bf16.msra.mxu0 0
      %794 = vmatprep.subr.bf16.mxu0 0
      %795 = vmatpush1.bf16.msra.mxu0 0
      %796 = vmatprep.subr.bf16.mxu0 0
      %797 = vmatpush1.bf16.msra.mxu0 0
      %798 = vmatprep.subr.bf16.mxu0 0
      %799 = vmatpush1.bf16.msra.mxu0 0
      %800 = vmatprep.subr.bf16.mxu0 0
      %801 = vmatpush1.bf16.msra.mxu0 0
      %802 = vmatprep.subr.bf16.mxu0 0
      %803 = vmatpush1.bf16.msra.mxu0 0
      %804 = vmatprep.subr.bf16.mxu0 0
      %805 = vmatpush1.bf16.msra.mxu0 %v785
      %806 = vmatprep.subr.bf16.mxu0 0
      %807 = vmatpush1.bf16.msra.mxu0 %v784
      %808 = vmatprep.subr.bf16.mxu0 0
      %809 = vmatpush2.bf16.msra.mxu0 0
      %810 = vmatprep.subr.bf16.mxu0 0
      %811 = vmatpush2.bf16.msra.mxu0 0
      %812 = vmatprep.subr.bf16.mxu0 0
      %813 = vmatpush2.bf16.msra.mxu0 0
      %814 = vmatprep.subr.bf16.mxu0 0
      %815 = vmatpush2.bf16.msra.mxu0 0
      %816 = vmatprep.subr.bf16.mxu0 0
      %817 = vmatpush2.bf16.msra.mxu0 0
      %818 = vmatprep.subr.bf16.mxu0 0
      %819 = vmatpush2.bf16.msra.mxu0 0
      %820 = vmatprep.subr.bf16.mxu0 0
      %821 = vmatpush2.bf16.msra.mxu0 0
      %822 = vmatprep.subr.bf16.mxu0 0
      %823 = vmatpush2.bf16.msra.mxu0 0
      %824 = vmatprep.mubr.bf16.mxu0 0
      %825 = vmatmul.mubr.bf16.gmra.mxu0 %v790
      %v826 = vpop.f32.mrf.mxu0
      %v827 = vadd.f32 %v771, %v826
      %v828 = vpop.f32.mrf.mxu0
      %v829 = vpop.f32.mrf.mxu0
      %v830 = vpop.f32.mrf.mxu0
      %831 = vdwg.mxu0
      %v832 = vlaneseq
      %v833 = vand.u32 %v832, 127
      %vm834 = vcmp.eq.s32.totalorder %v833, 4
      %836 = vset.pattern.permute.xlu0 0
      %837 = vperm.xlu0 %836, %v626
      %v838 = vpop.permute.xlu0 %837
      %v840 = vsel %vm834, %v838, 0.0
      %vm841 = vcmp.eq.s32.totalorder %v833, 5
      %842 = vset.pattern.permute.xlu0 1
      %843 = vperm.xlu0 %842, %v626
      %v844 = vpop.permute.xlu0 %843
      %v846 = vsel %vm841, %v844, 0.0
      %v847 = vadd.f32 %v840, %v846
      %v848 = vlaneseq
      %v849 = vshrl.u32 %v848, 7
      %v850 = vsub.s32 0, %v849
      %v851 = vrot.slane %v847, %v850
      %v852 = vadd.f32 %v827, %v851
      %vm853 = vcmask 64512
      %854 = vst.msk [vmem:[%s371] sm:$0xff] %vm853, %v852
      %p855 = scmp.lt.s32.totalorder %s21, 1
      %s856 = scalar_select %p855, %s21, 1
      %s857 = smul.addr %s856, 8
      %s858 = scalar_lea.vmem %s10, %s857
      // Predicated region
      $region61: #{tweet_model_forward.1} parent=59 // pred_check
        %p859 = pneg %p259
      $region62: #{tweet_model_forward.1} parent=59 // pred_check_branch
        %861 = sbr.rel (%p859) target = $region64
      $region63: #{tweet_model_forward.1} parent=59 // pred_region
        _
      $region64: #{tweet_model_forward.1} parent=59 // pred_fallthru
        _
    $region60: #{tweet_model_forward.1} parent=5 // pred_fallthru
      _
    %p862 = scmp.le.s32.totalorder 2, %s16
    // Predicated region
    $region65: #{tweet_model_forward.1} parent=5 // pred_check
      %p863 = pneg %p862
    $region66: #{tweet_model_forward.1} parent=5 // pred_check_branch
      %865 = sbr.rel (%p863) target = $region68
    $region67: #{tweet_model_forward.1} parent=5 // pred_region
      %s866 = ssub.s32 %s16, 2
      // Predicated region
      $region69: #{tweet_model_forward.1} parent=67 // pred_check
        %p867 = pneg %p265
      $region70: #{tweet_model_forward.1} parent=67 // pred_check_branch
        %869 = sbr.rel (%p867) target = $region72
      $region71: #{tweet_model_forward.1} parent=67 // pred_region
        %p870 = scmp.lt.s32.totalorder %s22, 1
        %s871 = scalar_select %p870, %s22, 1
        %s872 = smul.addr %s871, 8
        %s873 = scalar_lea.vmem %s10, %s872
      $region72: #{tweet_model_forward.1} parent=67 // pred_fallthru
        _
    $region68: #{tweet_model_forward.1} parent=5 // pred_fallthru
      _
  $region6: #{tweet_model_forward.1} parent=0 // loop_footer
    %s20 = sadd.s32 1, %s16
  $region7: #{tweet_model_forward.1} parent=0 // loop_footer_branch
    %15 = sbr.rel target = $region3
  $region8: #{tweet_model_forward.1} parent=0 // loop_exit
    _

// kernel: tweet_model_forward.1
$region0: #{tweet_model_forward.1}
  #allocation0 [shape = 'u32[]', space=smem, size = 0x4, offset = 0x4, fixed_abs, tag = 'smem constant byte address 0x4 - core index']
  #allocation1 [shape = 'u32[144,128]{1,0:T(1,128)}', space=vmem, size = 0x12000, scoped, tag = 'internal scratch']
  %s0 = inlined_call_operand.vmem [shape: f32[2,8,1], index: 0, kind: input, shape index: {}]
  %s1 = inlined_call_operand.vmem [shape: bf16[2,8,96], index: 1, kind: input, shape index: {}]
  %s2 = inlined_call_operand.vmem [shape: f32[96,256], index: 2, kind: input, shape index: {}]
  %s3 = inlined_call_operand.vmem [shape: f32[1,256], index: 3, kind: input, shape index: {}]
  %s4 = inlined_call_operand.vmem [shape: f32[256,2], index: 4, kind: input, shape index: {}]
  %s5 = inlined_call_operand.vmem [shape: f32[1,2], index: 5, kind: input, shape index: {}]
  %s6 = inlined_call_operand.vmem [shape: bf16[96,96], index: 6, kind: input, shape index: {}]
  %s7 = inlined_call_operand.vmem [shape: f32[1,32], index: 7, kind: input, shape index: {}]
  %s8 = inlined_call_operand.vmem [shape: bf16[32,8], index: 8, kind: input, shape index: {}]
  %s9 = inlined_call_operand.vmem [shape: f32[1,8], index: 9, kind: input, shape index: {}]
  %s10 = inlined_call_operand.vmem [shape: f32[2,8,8], index: 10, kind: output, shape index: {}]
  %s11 = sld [smem:[#allocation0]]
  $region73: #{tweet_model_forward.1} parent=0
    _
  %s13 = ssub.s32 1, %s11
  %s14 = scalar_select 0, %s13, %s11
  loop: start=0, step=1, limit=4
  $region2: #{tweet_model_forward.1} parent=0 // loop_pre_header
    _
  $region3: #{tweet_model_forward.1} parent=0 // loop_header
    %s16 = sphi 0, %s20
    %p17 = scmp.ge.s32.totalorder %s16, 4
    %s26 = sphi 0, %s28
    %s29 = sphi 0, %s26
    %s30 = sphi 0, %s29
    %s46 = sphi 0, %s30
    %s52 = sphi 0, %s54
    %s55 = sphi 0, %s52
    %s56 = sphi 0, %s55
    %s72 = sphi 0, %s56
    %s76 = sphi 0, %s76
    %s78 = sphi 0, %s76
    %s79 = sphi 0, %s78
    %s93 = sphi 0, %s79
    %s97 = sphi 0, %s97
    %s99 = sphi 0, %s97
    %s100 = sphi 0, %s99
    %s114 = sphi 0, %s100
    %s118 = sphi 0, %s118
    %s120 = sphi 0, %s118
    %s121 = sphi 0, %s120
    %s135 = sphi 0, %s121
    %s139 = sphi 0, %s139
    %s141 = sphi 0, %s139
    %s142 = sphi 0, %s141
    %s156 = sphi 0, %s142
    %s160 = sphi 0, %s160
    %s162 = sphi 0, %s160
    %s163 = sphi 0, %s162
    %s177 = sphi 0, %s163
    %s181 = sphi 0, %s181
    %s183 = sphi 0, %s181
    %s184 = sphi 0, %s183
    %s198 = sphi 0, %s184
    %s202 = sphi 0, %s202
    %s204 = sphi 0, %s202
    %s205 = sphi 0, %s204
    %s219 = sphi 0, %s205
    %s223 = sphi 0, %s223
    %s225 = sphi 0, %s223
    %s226 = sphi 0, %s225
    %s240 = sphi 0, %s226
    %s246 = sphi 0, %s248
    %s249 = sphi 0, %s246
    %s250 = sphi 0, %s249
    %s266 = sphi 0, %s250
  $region4: #{tweet_model_forward.1} parent=0 // loop_header_branch
    %19 = sbr.rel (%p17) target = $region8
  $region5: #{tweet_model_forward.1} parent=0 // loop_body
    %s21 = ssub.s32 %s16, 1
    %s22 = ssub.s32 %s16, 2
    %s23 = sadd.s32 %s16, 1
    %s24 = ssub.s32 %s16, %s23
    %p25 = scmp.eq.s32.totalorder %s24, 0
    %s27 = sadd.s32 %s26, 1
    %s28 = scalar_select %p25, %s26, %s27
    %p31 = pneg %p25
    %p32 = scmp.eq.s32.totalorder %s16, 1
    %p33 = por %p31, %p32
    %p34 = scmp.ne.s32.totalorder %s26, %s29
    %p35 = scmp.eq.s32.totalorder %s16, 0
    %p36 = por %p34, %p35
    %p37 = scmp.ne.s32.totalorder %s26, %s29
    %p38 = scmp.eq.s32.totalorder %s21, 1
    %p39 = por %p37, %p38
    %p40 = scmp.ne.s32.totalorder %s29, %s30
    %p41 = scmp.eq.s32.totalorder %s21, 0
    %p42 = por %p40, %p41
    %p43 = scmp.ne.s32.totalorder %s29, %s30
    %p44 = scmp.eq.s32.totalorder %s22, 1
    %p45 = por %p43, %p44
    %p47 = scmp.ne.s32.totalorder %s30, %s46
    %p48 = scmp.eq.s32.totalorder %s22, 0
    %p49 = por %p47, %p48
    %s50 = ssub.s32 %s16, %s23
    %p51 = scmp.eq.s32.totalorder %s50, 0
    %s53 = sadd.s32 %s52, 1
    %s54 = scalar_select %p51, %s52, %s53
    %p57 = pneg %p51
    %p58 = scmp.eq.s32.totalorder %s16, 1
    %p59 = por %p57, %p58
    %p60 = scmp.ne.s32.totalorder %s52, %s55
    %p61 = scmp.eq.s32.totalorder %s16, 0
    %p62 = por %p60, %p61
    %p63 = scmp.ne.s32.totalorder %s52, %s55
    %p64 = scmp.eq.s32.totalorder %s21, 1
    %p65 = por %p63, %p64
    %p66 = scmp.ne.s32.totalorder %s55, %s56
    %p67 = scmp.eq.s32.totalorder %s21, 0
    %p68 = por %p66, %p67
    %p69 = scmp.ne.s32.totalorder %s55, %s56
    %p70 = scmp.eq.s32.totalorder %s22, 1
    %p71 = por %p69, %p70
    %p73 = scmp.ne.s32.totalorder %s56, %s72
    %p74 = scmp.eq.s32.totalorder %s22, 0
    %p75 = por %p73, %p74
    %s77 = sadd.s32 %s76, 1
    %p80 = scmp.eq.s32.totalorder %s16, 1
    %p81 = scmp.ne.s32.totalorder %s76, %s78
    %p82 = scmp.eq.s32.totalorder %s16, 0
    %p83 = por %p81, %p82
    %p84 = scmp.ne.s32.totalorder %s76, %s78
    %p85 = scmp.eq.s32.totalorder %s21, 1
    %p86 = por %p84, %p85
    %p87 = scmp.ne.s32.totalorder %s78, %s79
    %p88 = scmp.eq.s32.totalorder %s21, 0
    %p89 = por %p87, %p88
    %p90 = scmp.ne.s32.totalorder %s78, %s79
    %p91 = scmp.eq.s32.totalorder %s22, 1
    %p92 = por %p90, %p91
    %p94 = scmp.ne.s32.totalorder %s79, %s93
    %p95 = scmp.eq.s32.totalorder %s22, 0
    %p96 = por %p94, %p95
    %s98 = sadd.s32 %s97, 1
    %p101 = scmp.eq.s32.totalorder %s16, 1
    %p102 = scmp.ne.s32.totalorder %s97, %s99
    %p103 = scmp.eq.s32.totalorder %s16, 0
    %p104 = por %p102, %p103
    %p105 = scmp.ne.s32.totalorder %s97, %s99
    %p106 = scmp.eq.s32.totalorder %s21, 1
    %p107 = por %p105, %p106
    %p108 = scmp.ne.s32.totalorder %s99, %s100
    %p109 = scmp.eq.s32.totalorder %s21, 0
    %p110 = por %p108, %p109
    %p111 = scmp.ne.s32.totalorder %s99, %s100
    %p112 = scmp.eq.s32.totalorder %s22, 1
    %p113 = por %p111, %p112
    %p115 = scmp.ne.s32.totalorder %s100, %s114
    %p116 = scmp.eq.s32.totalorder %s22, 0
    %p117 = por %p115, %p116
    %s119 = sadd.s32 %s118, 1
    %p122 = scmp.eq.s32.totalorder %s16, 1
    %p123 = scmp.ne.s32.totalorder %s118, %s120
    %p124 = scmp.eq.s32.totalorder %s16, 0
    %p125 = por %p123, %p124
    %p126 = scmp.ne.s32.totalorder %s118, %s120
    %p127 = scmp.eq.s32.totalorder %s21, 1
    %p128 = por %p126, %p127
    %p129 = scmp.ne.s32.totalorder %s120, %s121
    %p130 = scmp.eq.s32.totalorder %s21, 0
    %p131 = por %p129, %p130
    %p132 = scmp.ne.s32.totalorder %s120, %s121
    %p133 = scmp.eq.s32.totalorder %s22, 1
    %p134 = por %p132, %p133
    %p136 = scmp.ne.s32.totalorder %s121, %s135
    %p137 = scmp.eq.s32.totalorder %s22, 0
    %p138 = por %p136, %p137
    %s140 = sadd.s32 %s139, 1
    %p143 = scmp.eq.s32.totalorder %s16, 1
    %p144 = scmp.ne.s32.totalorder %s139, %s141
    %p145 = scmp.eq.s32.totalorder %s16, 0
    %p146 = por %p144, %p145
    %p147 = scmp.ne.s32.totalorder %s139, %s141
    %p148 = scmp.eq.s32.totalorder %s21, 1
    %p149 = por %p147, %p148
    %p150 = scmp.ne.s32.totalorder %s141, %s142
    %p151 = scmp.eq.s32.totalorder %s21, 0
    %p152 = por %p150, %p151
    %p153 = scmp.ne.s32.totalorder %s141, %s142
    %p154 = scmp.eq.s32.totalorder %s22, 1
    %p155 = por %p153, %p154
    %p157 = scmp.ne.s32.totalorder %s142, %s156
    %p158 = scmp.eq.s32.totalorder %s22, 0
    %p159 = por %p157, %p158
    %s161 = sadd.s32 %s160, 1
    %p164 = scmp.eq.s32.totalorder %s16, 1
    %p165 = scmp.ne.s32.totalorder %s160, %s162
    %p166 = scmp.eq.s32.totalorder %s16, 0
    %p167 = por %p165, %p166
    %p168 = scmp.ne.s32.totalorder %s160, %s162
    %p169 = scmp.eq.s32.totalorder %s21, 1
    %p170 = por %p168, %p169
    %p171 = scmp.ne.s32.totalorder %s162, %s163
    %p172 = scmp.eq.s32.totalorder %s21, 0
    %p173 = por %p171, %p172
    %p174 = scmp.ne.s32.totalorder %s162, %s163
    %p175 = scmp.eq.s32.totalorder %s22, 1
    %p176 = por %p174, %p175
    %p178 = scmp.ne.s32.totalorder %s163, %s177
    %p179 = scmp.eq.s32.totalorder %s22, 0
    %p180 = por %p178, %p179
    %s182 = sadd.s32 %s181, 1
    %p185 = scmp.eq.s32.totalorder %s16, 1
    %p186 = scmp.ne.s32.totalorder %s181, %s183
    %p187 = scmp.eq.s32.totalorder %s16, 0
    %p188 = por %p186, %p187
    %p189 = scmp.ne.s32.totalorder %s181, %s183
    %p190 = scmp.eq.s32.totalorder %s21, 1
    %p191 = por %p189, %p190
    %p192 = scmp.ne.s32.totalorder %s183, %s184
    %p193 = scmp.eq.s32.totalorder %s21, 0
    %p194 = por %p192, %p193
    %p195 = scmp.ne.s32.totalorder %s183, %s184
    %p196 = scmp.eq.s32.totalorder %s22, 1
    %p197 = por %p195, %p196
    %p199 = scmp.ne.s32.totalorder %s184, %s198
    %p200 = scmp.eq.s32.totalorder %s22, 0
    %p201 = por %p199, %p200
    %s203 = sadd.s32 %s202, 1
    %p206 = scmp.eq.s32.totalorder %s16, 1
    %p207 = scmp.ne.s32.totalorder %s202, %s204
    %p208 = scmp.eq.s32.totalorder %s16, 0
    %p209 = por %p207, %p208
    %p210 = scmp.ne.s32.totalorder %s202, %s204
    %p211 = scmp.eq.s32.totalorder %s21, 1
    %p212 = por %p210, %p211
    %p213 = scmp.ne.s32.totalorder %s204, %s205
    %p214 = scmp.eq.s32.totalorder %s21, 0
    %p215 = por %p213, %p214
    %p216 = scmp.ne.s32.totalorder %s204, %s205
    %p217 = scmp.eq.s32.totalorder %s22, 1
    %p218 = por %p216, %p217
    %p220 = scmp.ne.s32.totalorder %s205, %s219
    %p221 = scmp.eq.s32.totalorder %s22, 0
    %p222 = por %p220, %p221
    %s224 = sadd.s32 %s223, 1
    %p227 = scmp.eq.s32.totalorder %s16, 1
    %p228 = scmp.ne.s32.totalorder %s223, %s225
    %p229 = scmp.eq.s32.totalorder %s16, 0
    %p230 = por %p228, %p229
    %p231 = scmp.ne.s32.totalorder %s223, %s225
    %p232 = scmp.eq.s32.totalorder %s21, 1
    %p233 = por %p231, %p232
    %p234 = scmp.ne.s32.totalorder %s225, %s226
    %p235 = scmp.eq.s32.totalorder %s21, 0
    %p236 = por %p234, %p235
    %p237 = scmp.ne.s32.totalorder %s225, %s226
    %p238 = scmp.eq.s32.totalorder %s22, 1
    %p239 = por %p237, %p238
    %p241 = scmp.ne.s32.totalorder %s226, %s240
    %p242 = scmp.eq.s32.totalorder %s22, 0
    %p243 = por %p241, %p242
    %s244 = ssub.s32 %s16, %s23
    %p245 = scmp.eq.s32.totalorder %s244, 0
    %s247 = sadd.s32 %s246, 1
    %s248 = scalar_select %p245, %s246, %s247
    %p251 = pneg %p245
    %p252 = scmp.eq.s32.totalorder %s16, 1
    %p253 = por %p251, %p252
    %p254 = scmp.ne.s32.totalorder %s246, %s249
    %p255 = scmp.eq.s32.totalorder %s16, 0
    %p256 = por %p254, %p255
    %p257 = scmp.ne.s32.totalorder %s246, %s249
    %p258 = scmp.eq.s32.totalorder %s21, 1
    %p259 = por %p257, %p258
    %p260 = scmp.ne.s32.totalorder %s249, %s250
    %p261 = scmp.eq.s32.totalorder %s21, 0
    %p262 = por %p260, %p261
    %p263 = scmp.ne.s32.totalorder %s249, %s250
    %p264 = scmp.eq.s32.totalorder %s22, 1
    %p265 = por %p263, %p264
    %p267 = scmp.ne.s32.totalorder %s250, %s266
    %p268 = scmp.eq.s32.totalorder %s22, 0
    %p269 = por %p267, %p268
    %p270 = scmp.le.s32.totalorder 1, %s16
    %p271 = scmp.lt.s32.totalorder %s16, 3
    %p272 = pnand %p270, %p271
    %p273 = pneg %p272
    // Predicated region
    $region9: #{tweet_model_forward.1} parent=5 // pred_check
      _
    $region10: #{tweet_model_forward.1} parent=5 // pred_check_branch
      %275 = sbr.rel (%p272) target = $region12
    $region11: #{tweet_model_forward.1} parent=5 // pred_region
      %s276 = ssub.s32 %s16, 1
      // Predicated region
      $region13: #{tweet_model_forward.1} parent=11 // pred_check
        %p277 = pneg %p89
      $region14: #{tweet_model_forward.1} parent=11 // pred_check_branch
        %279 = sbr.rel (%p277) target = $region16
      $region15: #{tweet_model_forward.1} parent=11 // pred_region
        _
      $region16: #{tweet_model_forward.1} parent=11 // pred_fallthru
        _
      // Predicated region
      $region17: #{tweet_model_forward.1} parent=11 // pred_check
        %p280 = pneg %p110
      $region18: #{tweet_model_forward.1} parent=11 // pred_check_branch
        %282 = sbr.rel (%p280) target = $region20
      $region19: #{tweet_model_forward.1} parent=11 // pred_region
        _
      $region20: #{tweet_model_forward.1} parent=11 // pred_fallthru
        _
      // Predicated region
      $region21: #{tweet_model_forward.1} parent=11 // pred_check
        %p283 = pneg %p131
      $region22: #{tweet_model_forward.1} parent=11 // pred_check_branch
        %285 = sbr.rel (%p283) target = $region24
      $region23: #{tweet_model_forward.1} parent=11 // pred_region
        _
      $region24: #{tweet_model_forward.1} parent=11 // pred_fallthru
        _
      // Predicated region
      $region25: #{tweet_model_forward.1} parent=11 // pred_check
        %p286 = pneg %p152
      $region26: #{tweet_model_forward.1} parent=11 // pred_check_branch
        %288 = sbr.rel (%p286) target = $region28
      $region27: #{tweet_model_forward.1} parent=11 // pred_region
        _
      $region28: #{tweet_model_forward.1} parent=11 // pred_fallthru
        _
      // Predicated region
      $region29: #{tweet_model_forward.1} parent=11 // pred_check
        %p289 = pneg %p173
      $region30: #{tweet_model_forward.1} parent=11 // pred_check_branch
        %291 = sbr.rel (%p289) target = $region32
      $region31: #{tweet_model_forward.1} parent=11 // pred_region
        _
      $region32: #{tweet_model_forward.1} parent=11 // pred_fallthru
        _
      // Predicated region
      $region33: #{tweet_model_forward.1} parent=11 // pred_check
        %p292 = pneg %p194
      $region34: #{tweet_model_forward.1} parent=11 // pred_check_branch
        %294 = sbr.rel (%p292) target = $region36
      $region35: #{tweet_model_forward.1} parent=11 // pred_region
        _
      $region36: #{tweet_model_forward.1} parent=11 // pred_fallthru
        _
      // Predicated region
      $region37: #{tweet_model_forward.1} parent=11 // pred_check
        %p295 = pneg %p215
      $region38: #{tweet_model_forward.1} parent=11 // pred_check_branch
        %297 = sbr.rel (%p295) target = $region40
      $region39: #{tweet_model_forward.1} parent=11 // pred_region
        _
      $region40: #{tweet_model_forward.1} parent=11 // pred_fallthru
        _
      // Predicated region
      $region41: #{tweet_model_forward.1} parent=11 // pred_check
        %p298 = pneg %p236
      $region42: #{tweet_model_forward.1} parent=11 // pred_check_branch
        %300 = sbr.rel (%p298) target = $region44
      $region43: #{tweet_model_forward.1} parent=11 // pred_region
        _
      $region44: #{tweet_model_forward.1} parent=11 // pred_fallthru
        _
    $region12: #{tweet_model_forward.1} parent=5 // pred_fallthru
      _
    %p301 = scmp.lt.s32.totalorder %s16, 2
    // Predicated region
    $region45: #{tweet_model_forward.1} parent=5 // pred_check
      %p302 = pneg %p301
    $region46: #{tweet_model_forward.1} parent=5 // pred_check_branch
      %304 = sbr.rel (%p302) target = $region48
    $region47: #{tweet_model_forward.1} parent=5 // pred_region
      // Predicated region
      $region49: #{tweet_model_forward.1} parent=47 // pred_check
        %p305 = pneg %p36
      $region50: #{tweet_model_forward.1} parent=47 // pred_check_branch
        %307 = sbr.rel (%p305) target = $region52
      $region51: #{tweet_model_forward.1} parent=47 // pred_region
        %p308 = scmp.lt.s32.totalorder %s16, 1
        %s309 = scalar_select %p308, %s16, 1
        %s310 = smul.addr %s309, 8
        %s311 = scalar_lea.vmem %s0, %s310
      $region52: #{tweet_model_forward.1} parent=47 // pred_fallthru
        _
      // Predicated region
      $region53: #{tweet_model_forward.1} parent=47 // pred_check
        %p312 = pneg %p62
      $region54: #{tweet_model_forward.1} parent=47 // pred_check_branch
        %314 = sbr.rel (%p312) target = $region56
      $region55: #{tweet_model_forward.1} parent=47 // pred_region
        %p315 = scmp.lt.s32.totalorder %s16, 1
        %s316 = scalar_select %p315, %s16, 1
        %s317 = smul.addr %s316, 4
        %s318 = scalar_lea.vmem %s1, %s317
      $region56: #{tweet_model_forward.1} parent=47 // pred_fallthru
        _
    $region48: #{tweet_model_forward.1} parent=5 // pred_fallthru
      _
    %p319 = scmp.le.s32.totalorder 1, %s16
    %p320 = scmp.lt.s32.totalorder %s16, 3
    %p321 = pnand %p319, %p320
    %p322 = pneg %p321
    // Predicated region
    $region57: #{tweet_model_forward.1} parent=5 // pred_check
      _
    $region58: #{tweet_model_forward.1} parent=5 // pred_check_branch
      %324 = sbr.rel (%p321) target = $region60
    $region59: #{tweet_model_forward.1} parent=5 // pred_region
      %s325 = ssub.s32 %s16, 1
      %p326 = scmp.lt.s32.totalorder %s21, 1
      %s327 = scalar_select %p326, %s21, 1
      %s328 = smul.addr %s327, 8
      %s329 = scalar_lea.vmem %s0, %s328
      %p330 = pneg %p42
      %p331 = pneg %p39
      %p332 = scmp.lt.s32.totalorder %s21, 1
      %s333 = scalar_select %p332, %s21, 1
      %s334 = smul.addr %s333, 4
      %s335 = scalar_lea.vmem %s1, %s334
      %p336 = pneg %p68
      %p337 = pneg %p65
      %p338 = pneg %p89
      %p339 = pneg %p86
      %p340 = pneg %p110
      %p341 = pneg %p107
      %p342 = pneg %p131
      %p343 = pneg %p128
      %p344 = pneg %p152
      %p345 = pneg %p149
      %p346 = pneg %p173
      %p347 = pneg %p170
      %p348 = pneg %p194
      %p349 = pneg %p191
      %p350 = pneg %p215
      %p351 = pneg %p212
      %p352 = pneg %p236
      %p353 = pneg %p233
      %p354 = pneg %p262
      %p355 = pneg %p259
      %p356 = scmp.lt.s32.totalorder %s21, 1
      %s357 = scalar_select %p356, %s21, 1
      %s358 = smul.addr %s357, 8
      %s359 = scalar_lea.vmem %s10, %s358
      %p360 = scmp.lt.s32.totalorder %s21, 1
      %s361 = scalar_select %p360, %s21, 1
      %s362 = smul.addr %s361, 8
      %s363 = scalar_lea.vmem %s0, %s362
      %p364 = scmp.lt.s32.totalorder %s21, 1
      %s365 = scalar_select %p364, %s21, 1
      %s366 = smul.addr %s365, 4
      %s367 = scalar_lea.vmem %s1, %s366
      %p368 = scmp.lt.s32.totalorder %s21, 1
      %s369 = scalar_select %p368, %s21, 1
      %s370 = smul.addr %s369, 8
      %s371 = scalar_lea.vmem %s10, %s370
      %v373 = vld [vmem:[%s367] sm:$0xf]
      %v374 = vld [vmem:[%s363] sm:$0xff]
      %v375 = vunpack.c.l.bf16 %v373
      %377 = vset.pattern.permute.xlu0 0
      %378 = vperm.xlu0 %377, %v374
      %v379 = vpop.permute.xlu0 %378
      %v381 = vmul.f32 %v375, %v379
      %vm382 = vcmask 785408
      %v383 = vsel %vm382, %v381, 0.0
      %v384 = vrot.slane %v383, 4
      %v385 = vadd.f32 %v383, %v384
      %v386 = vrot.slane %v385, 2
      %v387 = vadd.f32 %v385, %v386
      %v388 = vrot.slane %v387, 1
      %v389 = vadd.f32 %v387, %v388
      %vm390 = vcmask 7168
      %v391 = vsel %vm390, %v374, 0.0
      %v392 = vrot.slane %v391, 4
      %v393 = vadd.f32 %v391, %v392
      %v394 = vrot.slane %v393, 2
      %v395 = vadd.f32 %v393, %v394
      %v396 = vrot.slane %v395, 1
      %v397 = vadd.f32 %v395, %v396
      %399 = vset.pattern.permute.xlu0 0
      %400 = vperm.xlu0 %399, %v397
      %v401 = vpop.permute.xlu0 %400
      %v403 = vrcp.pop %v401
      %v404 = vmul.f32 %v389, %v403
      %v405 = vld [vmem:[%s2] sm:$0xff]
      %v406 = vld [vmem:[%s2 + $0x8] sm:$0xff]
      %v407 = vld [vmem:[%s2 + $0x10] sm:$0xff]
      %v408 = vld [vmem:[%s2 + $0x18] sm:$0xff]
      %v409 = vld [vmem:[%s2 + $0x20] sm:$0xff]
      %v410 = vld [vmem:[%s2 + $0x28] sm:$0xff]
      %v411 = vld [vmem:[%s2 + $0x30] sm:$0xff]
      %v412 = vld [vmem:[%s2 + $0x38] sm:$0xff]
      %v413 = vld [vmem:[%s2 + $0x40] sm:$0xff]
      %v414 = vld [vmem:[%s2 + $0x48] sm:$0xff]
      %v415 = vld [vmem:[%s2 + $0x50] sm:$0xff]
      %v416 = vld [vmem:[%s2 + $0x58] sm:$0xff]
      %v417 = vld [vmem:[%s2 + $0x60] sm:$0xff]
      %v418 = vld [vmem:[%s2 + $0x68] sm:$0xff]
      %v419 = vld [vmem:[%s2 + $0x70] sm:$0xff]
      %v420 = vld [vmem:[%s2 + $0x78] sm:$0xff]
      %v421 = vld [vmem:[%s2 + $0x80] sm:$0xff]
      %v422 = vld [vmem:[%s2 + $0x88] sm:$0xff]
      %v423 = vld [vmem:[%s2 + $0x90] sm:$0xff]
      %v424 = vld [vmem:[%s2 + $0x98] sm:$0xff]
      %v425 = vld [vmem:[%s2 + $0xa0] sm:$0xff]
      %v426 = vld [vmem:[%s2 + $0xa8] sm:$0xff]
      %v427 = vld [vmem:[%s2 + $0xb0] sm:$0xff]
      %v428 = vld [vmem:[%s2 + $0xb8] sm:$0xff]
      %v429 = vld [vmem:[%s3] sm:$0x3]
      %v431 = vlaneseq
      %v432 = vshrl.u32 %v431, 7
      %v433 = vsub.s32 0, %v432
      %v434 = vrot.slane %v429, %v433
      %v435 = vlaneseq
      %v436 = vshrl.u32 %v435, 7
      %v437 = vsub.s32 1, %v436
      %v438 = vrot.slane %v429, %v437
      %v442 = vsel %vm382, %v404, 0
      %444 = vmatprep.subr.mxu0 0.0
      %445 = vmatpush1.msra.mxu0 0.0
      %446 = vmatprep.subr.mxu0 0.0
      %447 = vmatpush1.msra.mxu0 0.0
      %448 = vmatprep.subr.mxu0 0.0
      %449 = vmatpush1.msra.mxu0 0.0
      %450 = vmatprep.subr.mxu0 0.0
      %451 = vmatpush1.msra.mxu0 0.0
      %452 = vmatprep.subr.mxu0 %v428
      %453 = vmatpush1.msra.mxu0 %v427
      %454 = vmatprep.subr.mxu0 %v426
      %455 = vmatpush1.msra.mxu0 %v425
      %456 = vmatprep.subr.mxu0 %v424
      %457 = vmatpush1.msra.mxu0 %v423
      %458 = vmatprep.subr.mxu0 %v422
      %459 = vmatpush1.msra.mxu0 %v421
      %460 = vmatprep.subr.mxu0 %v420
      %461 = vmatpush1.msra.mxu0 %v419
      %462 = vmatprep.subr.mxu0 %v418
      %463 = vmatpush1.msra.mxu0 %v417
      %464 = vmatprep.subr.mxu0 %v416
      %465 = vmatpush1.msra.mxu0 %v415
      %466 = vmatprep.subr.mxu0 %v414
      %467 = vmatpush1.msra.mxu0 %v413
      %468 = vmatprep.subr.mxu0 %v412
      %469 = vmatpush1.msra.mxu0 %v411
      %470 = vmatprep.subr.mxu0 %v410
      %471 = vmatpush1.msra.mxu0 %v409
      %472 = vmatprep.subr.mxu0 %v408
      %473 = vmatpush1.msra.mxu0 %v407
      %474 = vmatprep.subr.mxu0 %v406
      %475 = vmatpush1.msra.mxu0 %v405
      %476 = vmatprep.subr.mxu0 0.0
      %477 = vmatpush2.msra.mxu0 0.0
      %478 = vmatprep.subr.mxu0 0.0
      %479 = vmatpush2.msra.mxu0 0.0
      %480 = vmatprep.subr.mxu0 0.0
      %481 = vmatpush2.msra.mxu0 0.0
      %482 = vmatprep.subr.mxu0 0.0
      %483 = vmatpush2.msra.mxu0 0.0
      %484 = vmatprep.subr.mxu0 0.0
      %485 = vmatpush2.msra.mxu0 0.0
      %486 = vmatprep.subr.mxu0 0.0
      %487 = vmatpush2.msra.mxu0 0.0
      %488 = vmatprep.subr.mxu0 0.0
      %489 = vmatpush2.msra.mxu0 0.0
      %490 = vmatprep.subr.mxu0 0.0
      %491 = vmatpush2.msra.mxu0 0.0
      %492 = vmatprep.subr.mxu0 0.0
      %493 = vmatpush2.msra.mxu0 0.0
      %494 = vmatprep.subr.mxu0 0.0
      %495 = vmatpush2.msra.mxu0 0.0
      %496 = vmatprep.subr.mxu0 0.0
      %497 = vmatpush2.msra.mxu0 0.0
      %498 = vmatprep.subr.mxu0 0.0
      %499 = vmatpush2.msra.mxu0 0.0
      %500 = vmatprep.subr.mxu0 0.0
      %501 = vmatpush2.msra.mxu0 0.0
      %502 = vmatprep.subr.mxu0 0.0
      %503 = vmatpush2.msra.mxu0 0.0
      %504 = vmatprep.subr.mxu0 0.0
      %505 = vmatpush2.msra.mxu0 0.0
      %506 = vmatprep.subr.mxu0 0.0
      %507 = vmatpush2.msra.mxu0 0.0
      %508 = vmatprep.mubr.f32.mxu0 0.0
      %509 = vmatmul.mubr.f32.gmra.mxu0 %v442
      %v510 = vpop.f32.mrf.mxu0
      %v511 = vadd.f32 %v434, %v510
      %v512 = vpop.f32.mrf.mxu0
      %v513 = vadd.f32 %v438, %v512
      %514 = vdwg.mxu0
      %v515 = vmul.f32 %v511, 0.5
      %v516 = vmul.f32 %v513, 0.5
      %v517 = vrcp.pop 1.4142135
      %v518 = vmul.f32 %v511, %v517
      %v519 = vmul.f32 %v513, %v517
      %v520 = verf.f32.pop %v518
      %v521 = verf.f32.pop %v519
      %v522 = vadd.f32 %v520, 1.0
      %v523 = vadd.f32 %v521, 1.0
      %v524 = vmul.f32 %v515, %v522
      %v525 = vmul.f32 %v516, %v523
      %v526 = vld [vmem:[%s4] sm:$0xff]
      %v527 = vld [vmem:[%s4 + $0x8] sm:$0xff]
      %v528 = vld [vmem:[%s4 + $0x10] sm:$0xff]
      %v529 = vld [vmem:[%s4 + $0x18] sm:$0xff]
      %v530 = vld [vmem:[%s4 + $0x20] sm:$0xff]
      %v531 = vld [vmem:[%s4 + $0x28] sm:$0xff]
      %v532 = vld [vmem:[%s4 + $0x30] sm:$0xff]
      %v533 = vld [vmem:[%s4 + $0x38] sm:$0xff]
      %v534 = vld [vmem:[%s4 + $0x40] sm:$0xff]
      %v535 = vld [vmem:[%s4 + $0x48] sm:$0xff]
      %v536 = vld [vmem:[%s4 + $0x50] sm:$0xff]
      %v537 = vld [vmem:[%s4 + $0x58] sm:$0xff]
      %v538 = vld [vmem:[%s4 + $0x60] sm:$0xff]
      %v539 = vld [vmem:[%s4 + $0x68] sm:$0xff]
      %v540 = vld [vmem:[%s4 + $0x70] sm:$0xff]
      %v541 = vld [vmem:[%s4 + $0x78] sm:$0xff]
      %v542 = vld [vmem:[%s4 + $0x80] sm:$0xff]
      %v543 = vld [vmem:[%s4 + $0x88] sm:$0xff]
      %v544 = vld [vmem:[%s4 + $0x90] sm:$0xff]
      %v545 = vld [vmem:[%s4 + $0x98] sm:$0xff]
      %v546 = vld [vmem:[%s4 + $0xa0] sm:$0xff]
      %v547 = vld [vmem:[%s4 + $0xa8] sm:$0xff]
      %v548 = vld [vmem:[%s4 + $0xb0] sm:$0xff]
      %v549 = vld [vmem:[%s4 + $0xb8] sm:$0xff]
      %v550 = vld [vmem:[%s4 + $0xc0] sm:$0xff]
      %v551 = vld [vmem:[%s4 + $0xc8] sm:$0xff]
      %v552 = vld [vmem:[%s4 + $0xd0] sm:$0xff]
      %v553 = vld [vmem:[%s4 + $0xd8] sm:$0xff]
      %v554 = vld [vmem:[%s4 + $0xe0] sm:$0xff]
      %v555 = vld [vmem:[%s4 + $0xe8] sm:$0xff]
      %v556 = vld [vmem:[%s4 + $0xf0] sm:$0xff]
      %v557 = vld [vmem:[%s4 + $0xf8] sm:$0xff]
      %v558 = vld [vmem:[%s5] sm:$0x1]
      %559 = vmatprep.subr.mxu0 0.0
      %560 = vmatpush1.msra.mxu0 %v541
      %561 = vmatprep.subr.mxu0 0.0
      %562 = vmatpush1.msra.mxu0 %v540
      %563 = vmatprep.subr.mxu0 0.0
      %564 = vmatpush1.msra.mxu0 %v539
      %565 = vmatprep.subr.mxu0 0.0
      %566 = vmatpush1.msra.mxu0 %v538
      %567 = vmatprep.subr.mxu0 0.0
      %568 = vmatpush1.msra.mxu0 %v537
      %569 = vmatprep.subr.mxu0 0.0
      %570 = vmatpush1.msra.mxu0 %v536
      %571 = vmatprep.subr.mxu0 0.0
      %572 = vmatpush1.msra.mxu0 %v535
      %573 = vmatprep.subr.mxu0 0.0
      %574 = vmatpush1.msra.mxu0 %v534
      %575 = vmatprep.subr.mxu0 0.0
      %576 = vmatpush1.msra.mxu0 %v533
      %577 = vmatprep.subr.mxu0 0.0
      %578 = vmatpush1.msra.mxu0 %v532
      %579 = vmatprep.subr.mxu0 0.0
      %580 = vmatpush1.msra.mxu0 %v531
      %581 = vmatprep.subr.mxu0 0.0
      %582 = vmatpush1.msra.mxu0 %v530
      %583 = vmatprep.subr.mxu0 0.0
      %584 = vmatpush1.msra.mxu0 %v529
      %585 = vmatprep.subr.mxu0 0.0
      %586 = vmatpush1.msra.mxu0 %v528
      %587 = vmatprep.subr.mxu0 0.0
      %588 = vmatpush1.msra.mxu0 %v527
      %589 = vmatprep.subr.mxu0 0.0
      %590 = vmatpush1.msra.mxu0 %v526
      %591 = vmatprep.subr.mxu0 0.0
      %592 = vmatpush2.msra.mxu0 %v557
      %593 = vmatprep.subr.mxu0 0.0
      %594 = vmatpush2.msra.mxu0 %v556
      %595 = vmatprep.subr.mxu0 0.0
      %596 = vmatpush2.msra.mxu0 %v555
      %597 = vmatprep.subr.mxu0 0.0
      %598 = vmatpush2.msra.mxu0 %v554
      %599 = vmatprep.subr.mxu0 0.0
      %600 = vmatpush2.msra.mxu0 %v553
      %601 = vmatprep.subr.mxu0 0.0
      %602 = vmatpush2.msra.mxu0 %v552
      %603 = vmatprep.subr.mxu0 0.0
      %604 = vmatpush2.msra.mxu0 %v551
      %605 = vmatprep.subr.mxu0 0.0
      %606 = vmatpush2.msra.mxu0 %v550
      %607 = vmatprep.subr.mxu0 0.0
      %608 = vmatpush2.msra.mxu0 %v549
      %609 = vmatprep.subr.mxu0 0.0
      %610 = vmatpush2.msra.mxu0 %v548
      %611 = vmatprep.subr.mxu0 0.0
      %612 = vmatpush2.msra.mxu0 %v547
      %613 = vmatprep.subr.mxu0 0.0
      %614 = vmatpush2.msra.mxu0 %v546
      %615 = vmatprep.subr.mxu0 0.0
      %616 = vmatpush2.msra.mxu0 %v545
      %617 = vmatprep.subr.mxu0 0.0
      %618 = vmatpush2.msra.mxu0 %v544
      %619 = vmatprep.subr.mxu0 0.0
      %620 = vmatpush2.msra.mxu0 %v543
      %621 = vmatprep.subr.mxu0 0.0
      %622 = vmatpush2.msra.mxu0 %v542
      %623 = vmatprep.mubr.f32.mxu0 %v525
      %624 = vmatmul.mubr.f32.gmra.mxu0 %v524
      %v625 = vpop.f32.mrf.mxu0
      %v626 = vadd.f32 %v558, %v625
      %v627 = vpop.f32.mrf.mxu0
      %628 = vdwg.mxu0
      %v629 = vld [vmem:[%s6] sm:$0xf]
      %v630 = vld [vmem:[%s6 + $0x4] sm:$0xf]
      %v631 = vld [vmem:[%s6 + $0x8] sm:$0xf]
      %v632 = vld [vmem:[%s6 + $0xc] sm:$0xf]
      %v633 = vld [vmem:[%s6 + $0x10] sm:$0xf]
      %v634 = vld [vmem:[%s6 + $0x14] sm:$0xf]
      %v635 = vld [vmem:[%s6 + $0x18] sm:$0xf]
      %v636 = vld [vmem:[%s6 + $0x1c] sm:$0xf]
      %v637 = vld [vmem:[%s6 + $0x20] sm:$0xf]
      %v638 = vld [vmem:[%s6 + $0x24] sm:$0xf]
      %v639 = vld [vmem:[%s6 + $0x28] sm:$0xf]
      %v640 = vld [vmem:[%s6 + $0x2c] sm:$0xf]
      %v653 = vunpack.c.l.b16 %v629
      %v654 = vunpack.c.l.b16 %v630
      %v655 = vunpack.c.l.b16 %v631
      %v656 = vunpack.c.l.b16 %v632
      %v657 = vunpack.c.l.b16 %v633
      %v658 = vunpack.c.l.b16 %v634
      %v659 = vunpack.c.l.b16 %v635
      %v660 = vunpack.c.l.b16 %v636
      %v661 = vunpack.c.l.b16 %v637
      %v662 = vunpack.c.l.b16 %v638
      %v663 = vunpack.c.l.b16 %v639
      %v664 = vunpack.c.l.b16 %v640
      %v665 = vpack.c.b16 %v654, %v653
      %v666 = vpack.c.b16 %v656, %v655
      %v667 = vpack.c.b16 %v658, %v657
      %v668 = vpack.c.b16 %v660, %v659
      %v669 = vpack.c.b16 %v662, %v661
      %v670 = vpack.c.b16 %v664, %v663
      %v678 = vsel %vm382, %v373, 0
      %680 = vmatprep.subr.bf16.mxu0 0
      %681 = vmatpush1.bf16.msra.mxu0 0
      %682 = vmatprep.subr.bf16.mxu0 0
      %683 = vmatpush1.bf16.msra.mxu0 0
      %684 = vmatprep.subr.bf16.mxu0 0
      %685 = vmatpush1.bf16.msra.mxu0 %v670
      %686 = vmatprep.subr.bf16.mxu0 0
      %687 = vmatpush1.bf16.msra.mxu0 %v669
      %688 = vmatprep.subr.bf16.mxu0 0
      %689 = vmatpush1.bf16.msra.mxu0 %v668
      %690 = vmatprep.subr.bf16.mxu0 0
      %691 = vmatpush1.bf16.msra.mxu0 %v667
      %692 = vmatprep.subr.bf16.mxu0 0
      %693 = vmatpush1.bf16.msra.mxu0 %v666
      %694 = vmatprep.subr.bf16.mxu0 0
      %695 = vmatpush1.bf16.msra.mxu0 %v665
      %696 = vmatprep.subr.bf16.mxu0 0
      %697 = vmatpush2.bf16.msra.mxu0 0
      %698 = vmatprep.subr.bf16.mxu0 0
      %699 = vmatpush2.bf16.msra.mxu0 0
      %700 = vmatprep.subr.bf16.mxu0 0
      %701 = vmatpush2.bf16.msra.mxu0 0
      %702 = vmatprep.subr.bf16.mxu0 0
      %703 = vmatpush2.bf16.msra.mxu0 0
      %704 = vmatprep.subr.bf16.mxu0 0
      %705 = vmatpush2.bf16.msra.mxu0 0
      %706 = vmatprep.subr.bf16.mxu0 0
      %707 = vmatpush2.bf16.msra.mxu0 0
      %708 = vmatprep.subr.bf16.mxu0 0
      %709 = vmatpush2.bf16.msra.mxu0 0
      %710 = vmatprep.subr.bf16.mxu0 0
      %711 = vmatpush2.bf16.msra.mxu0 0
      %712 = vmatprep.mubr.bf16.mxu0 0
      %713 = vmatmul.mubr.bf16.gmra.mxu0 %v678
      %v714 = vpop.f32.mrf.mxu0
      %v715 = vadd.f32 0.0, %v714
      %v716 = vpop.f32.mrf.mxu0
      %v717 = vpop.f32.mrf.mxu0
      %v718 = vpop.f32.mrf.mxu0
      %719 = vdwg.mxu0
      %v720 = vlaneseq
      %v721 = vshrl.u32 %v720, 7
      %vm722 = vcmp.eq.s32.totalorder %v721, 0
      %vm723 = vcmp.eq.s32.totalorder %v721, 7
      %v724 = vld [vmem:[%s7] sm:$0x1]
      %v726 = vlaneseq
      %v727 = vshrl.u32 %v726, 7
      %v728 = vsub.s32 0, %v727
      %v729 = vrot.slane %v724, %v728
      %730 = vrot.lane.b32.xlu0 %v729, 32
      %v731 = vpop.permute.xlu0 %730
      %v733 = vadd.f32 %v715, %v731
      %v734 = vrot.slane %v715, 7
      %v735 = vsel %vm722, 1, 0
      %vm736 = vcmp.eq.s32.totalorder %v735, 1
      %v737 = vsel %vm736, 0.0, %v734
      %739 = vrot.lane.b32.xlu0 %v737, 32
      %v740 = vpop.permute.xlu0 %739
      %v742 = vadd.f32 %v733, %v740
      %744 = vrot.lane.b32.xlu0 %v715, 64
      %v745 = vpop.permute.xlu0 %744
      %v747 = vrot.slane %v745, 1
      %v748 = vsel %vm723, 1, 0
      %vm749 = vcmp.eq.s32.totalorder %v748, 1
      %v750 = vsel %vm749, 0.0, %v747
      %752 = vrot.lane.b32.xlu0 %v750, 32
      %v753 = vpop.permute.xlu0 %752
      %v755 = vadd.f32 %v742, %v753
      %v756 = vmul.f32 %v755, 0.5
      %v757 = vmul.f32 %v755, %v517
      %v758 = verf.f32.pop %v757
      %v759 = vadd.f32 %v758, 1.0
      %v760 = vmul.f32 %v756, %v759
      %v761 = vpack.c.bf16 %v760, %v760
      %v762 = vld [vmem:[%s8] sm:$0xf]
      %v763 = vld [vmem:[%s8 + $0x4] sm:$0xf]
      %v764 = vld [vmem:[%s8 + $0x8] sm:$0xf]
      %v765 = vld [vmem:[%s8 + $0xc] sm:$0xf]
      %v766 = vld [vmem:[%s9] sm:$0x1]
      %v768 = vlaneseq
      %v769 = vshrl.u32 %v768, 7
      %v770 = vsub.s32 0, %v769
      %v771 = vrot.slane %v766, %v770
      %774 = vrot.lane.b32.xlu0 %v761, 96
      %v775 = vpop.permute.xlu0 %774
      %v780 = vunpack.c.l.b16 %v762
      %v781 = vunpack.c.l.b16 %v763
      %v782 = vunpack.c.l.b16 %v764
      %v783 = vunpack.c.l.b16 %v765
      %v784 = vpack.c.b16 %v781, %v780
      %v785 = vpack.c.b16 %v783, %v782
      %vm788 = vcmask 261120
      %v790 = vsel %vm788, %v775, 0
      %792 = vmatprep.subr.bf16.mxu0 0
      %793 = vmatpush1.bf16.msra.mxu0 0
      %794 = vmatprep.subr.bf16.mxu0 0
      %795 = vmatpush1.bf16.msra.mxu0 0
      %796 = vmatprep.subr.bf16.mxu0 0
      %797 = vmatpush1.bf16.msra.mxu0 0
      %798 = vmatprep.subr.bf16.mxu0 0
      %799 = vmatpush1.bf16.msra.mxu0 0
      %800 = vmatprep.subr.bf16.mxu0 0
      %801 = vmatpush1.bf16.msra.mxu0 0
      %802 = vmatprep.subr.bf16.mxu0 0
      %803 = vmatpush1.bf16.msra.mxu0 0
      %804 = vmatprep.subr.bf16.mxu0 0
      %805 = vmatpush1.bf16.msra.mxu0 %v785
      %806 = vmatprep.subr.bf16.mxu0 0
      %807 = vmatpush1.bf16.msra.mxu0 %v784
      %808 = vmatprep.subr.bf16.mxu0 0
      %809 = vmatpush2.bf16.msra.mxu0 0
      %810 = vmatprep.subr.bf16.mxu0 0
      %811 = vmatpush2.bf16.msra.mxu0 0
      %812 = vmatprep.subr.bf16.mxu0 0
      %813 = vmatpush2.bf16.msra.mxu0 0
      %814 = vmatprep.subr.bf16.mxu0 0
      %815 = vmatpush2.bf16.msra.mxu0 0
      %816 = vmatprep.subr.bf16.mxu0 0
      %817 = vmatpush2.bf16.msra.mxu0 0
      %818 = vmatprep.subr.bf16.mxu0 0
      %819 = vmatpush2.bf16.msra.mxu0 0
      %820 = vmatprep.subr.bf16.mxu0 0
      %821 = vmatpush2.bf16.msra.mxu0 0
      %822 = vmatprep.subr.bf16.mxu0 0
      %823 = vmatpush2.bf16.msra.mxu0 0
      %824 = vmatprep.mubr.bf16.mxu0 0
      %825 = vmatmul.mubr.bf16.gmra.mxu0 %v790
      %v826 = vpop.f32.mrf.mxu0
      %v827 = vadd.f32 %v771, %v826
      %v828 = vpop.f32.mrf.mxu0
      %v829 = vpop.f32.mrf.mxu0
      %v830 = vpop.f32.mrf.mxu0
      %831 = vdwg.mxu0
      %v832 = vlaneseq
      %v833 = vand.u32 %v832, 127
      %vm834 = vcmp.eq.s32.totalorder %v833, 4
      %836 = vset.pattern.permute.xlu0 0
      %837 = vperm.xlu0 %836, %v626
      %v838 = vpop.permute.xlu0 %837
      %v840 = vsel %vm834, %v838, 0.0
      %vm841 = vcmp.eq.s32.totalorder %v833, 5
      %842 = vset.pattern.permute.xlu0 1
      %843 = vperm.xlu0 %842, %v626
      %v844 = vpop.permute.xlu0 %843
      %v846 = vsel %vm841, %v844, 0.0
      %v847 = vadd.f32 %v840, %v846
      %v848 = vlaneseq
      %v849 = vshrl.u32 %v848, 7
      %v850 = vsub.s32 0, %v849
      %v851 = vrot.slane %v847, %v850
      %v852 = vadd.f32 %v827, %v851
      %vm853 = vcmask 64512
      %854 = vst.msk [vmem:[%s371] sm:$0xff] %vm853, %v852
      %p855 = scmp.lt.s32.totalorder %s21, 1
      %s856 = scalar_select %p855, %s21, 1
      %s857 = smul.addr %s856, 8
      %s858 = scalar_lea.vmem %s10, %s857
      // Predicated region
      $region61: #{tweet_model_forward.1} parent=59 // pred_check
        %p859 = pneg %p259
      $region62: #{tweet_model_forward.1} parent=59 // pred_check_branch
        %861 = sbr.rel (%p859) target = $region64
      $region63: #{tweet_model_forward.1} parent=59 // pred_region
        _
      $region64: #{tweet_model_forward.1} parent=59 // pred_fallthru
        _
    $region60: #{tweet_model_forward.1} parent=5 // pred_fallthru
      _
    %p862 = scmp.le.s32.totalorder 2, %s16
    // Predicated region
    $region65: #{tweet_model_forward.1} parent=5 // pred_check
      %p863 = pneg %p862
    $region66: #{tweet_model_forward.1} parent=5 // pred_check_branch
      %865 = sbr.rel (%p863) target = $region68
    $region67: #{tweet_model_forward.1} parent=5 // pred_region
      %s866 = ssub.s32 %s16, 2
      // Predicated region
      $region69: #{tweet_model_forward.1} parent=67 // pred_check
        %p867 = pneg %p265
      $region70: #{tweet_model_forward.1} parent=67 // pred_check_branch
        %869 = sbr.rel (%p867) target = $region72
      $region71: #{tweet_model_forward.1} parent=67 // pred_region
        %p870 = scmp.lt.s32.totalorder %s22, 1
        %s871 = scalar_select %p870, %s22, 1
        %s872 = smul.addr %s871, 8
        %s873 = scalar_lea.vmem %s10, %s872
      $region72: #{tweet_model_forward.1} parent=67 // pred_fallthru
        _
    $region68: #{tweet_model_forward.1} parent=5 // pred_fallthru
      _
  $region6: #{tweet_model_forward.1} parent=0 // loop_footer
    %s20 = sadd.s32 1, %s16
  $region7: #{tweet_model_forward.1} parent=0 // loop_footer_branch
    %15 = sbr.rel target = $region3
  $region8: #{tweet_model_forward.1} parent=0 // loop_exit
    _

</llo_original>
